<compile_context>
chip_gen: v7x
topology: tpu7x:2x2x1
jax: 0.10.0
libtpu: 0.0.40
codegen_flags: <defaults>
</compile_context>

<pallas_src>
import numpy as np
import jax
import jax.numpy as jnp
from jax import lax
from jax.experimental import pallas as pl
from jax.experimental.pallas import tpu as pltpu


def _gru_mi_e_chunk_kernel(cat_ref, at_ref,
                           wb_ref, eb_ref, wa_ref, wia_ref,
                           wba_ref, eo_ref,
                           out_ref,
                           h_ref, gb_ref, hh_ref):
    """One (batch_tile, time_chunk) grid step.

    cat_ref : (tc, Bt, Dcat)  concat(x_t, d_in_t) for the chunk   -- pipelined
    at_ref  : (tc, Bt, D)     precomputed d_out_t @ E              -- pipelined
    wb_ref  : (Dcat, 3H)  fused [W_fb|W_sb|W_ib]                   -- resident
    eb_ref  : (1, 3H)     fused [e_f|e_s|e_i]                      -- resident
    wa_ref  : (H, 2H)     fused [W_fa|W_sa]                        -- resident
    wia_ref : (H, H)                                               -- resident
    wba_ref : (H, D), eo_ref : (1, D)                              -- resident
    out_ref : (tc, Bt, D)
    h_ref   : (Bt, H)      hidden state, carried across time chunks
    gb_ref  : (tc, Bt, 3H) per-chunk input-gate pre-activations (scratch)
    hh_ref  : (tc, Bt, H)  per-chunk hidden history (scratch)
    """
    c = pl.program_id(1)   # time-chunk index (sequential / "arbitrary")

    @pl.when(c == 0)
    def _():
        h_ref[...] = jnp.zeros_like(h_ref)

    f32 = jnp.float32
    tc, bt, dcat = cat_ref.shape
    hdim = h_ref.shape[-1]

    # ---- off the serial path: fused input-gate matmul for the whole chunk ----
    cat2 = cat_ref[...].reshape(tc * bt, dcat)
    gb2 = jnp.dot(cat2, wb_ref[...], preferred_element_type=f32) + eb_ref[...]
    gb_ref[...] = gb2.reshape(tc, bt, 3 * hdim)

    # Recurrent weights loaded exactly once, outside the serial loop.
    wa = wa_ref[...]      # (H, 2H)
    wia = wia_ref[...]    # (H, H)

    def step(t, h):
        gb_t = gb_ref[t]                                       # (Bt, 3H)
        ga = jnp.dot(h, wa, preferred_element_type=f32)        # (Bt, 2H)
        f = jax.nn.sigmoid(gb_t[:, 0:hdim] + ga[:, 0:hdim])
        s = jax.nn.sigmoid(gb_t[:, hdim:2 * hdim] + ga[:, hdim:2 * hdim])
        cand = jnp.tanh(gb_t[:, 2 * hdim:3 * hdim]
                        + jnp.dot(h * s, wia, preferred_element_type=f32))
        h_new = h + f * (cand - h)        # == h*(1-f) + f*cand
        hh_ref[t] = h_new
        return h_new

    h_final = lax.fori_loop(0, tc, step, h_ref[...], unroll=True)
    h_ref[...] = h_final

    # ---- off the serial path: output projection + MI gating, one store/chunk ----
    hh2 = hh_ref[...].reshape(tc * bt, hdim)
    logits = jnp.dot(hh2, wba_ref[...], preferred_element_type=f32)
    logits = logits.reshape(tc, bt, -1)
    out_ref[...] = jax.nn.sigmoid(
        logits * (1.0 + at_ref[...]) + eo_ref[...]).astype(out_ref.dtype)


def basket_gru_mi_e_forward(x, fo, fi, params, discount_mask,
                            *, time_chunk=8, batch_tile=None):
    """Pallas implementation of basket_GRU_MI_E.forward (dropout / hiddens off).

    x  : (B, T, D) float
    fo : (B, T, K, F) float   (only slice [:, :, 1, :] is used)
    fi : (B, T, K, F) float   (only slice [:, :, 1, :] is used)
    params: dict of weights (see __main__)
    discount_mask: length-F boolean (numpy / python), static.
    Returns (B, T, D) float32 prediction sequence.
    """
    B, T, D = x.shape
    H = params["W_fa"].shape[0]
    f32 = jnp.float32

    mask_idx = np.nonzero(np.asarray(discount_mask))[0]
    idx = jnp.asarray(mask_idx, dtype=jnp.int32)

    # Static-mask column gather + concat (layout plumbing, once, in the wrapper).
    d_in = jnp.take(fi[:, :, 1, :], idx, axis=-1).astype(f32)    # (B, T, Dd)
    d_out = jnp.take(fo[:, :, 1, :], idx, axis=-1).astype(f32)   # (B, T, Dd)
    catvec = jnp.concatenate([x.astype(f32), d_in], axis=-1)     # (B, T, Dcat)
    Dcat = catvec.shape[-1]

    # At = d_out @ E has no dependence on h -> hoist off the recurrence as one
    # big batched matmul.
    At = jnp.einsum('btd,de->bte', d_out, params["E"].astype(f32))   # (B, T, D)

    # Fused gate weights / biases.
    W_b = jnp.concatenate(
        [params["W_fb"], params["W_sb"], params["W_ib"]], axis=1).astype(f32)  # (Dcat, 3H)
    e_b = jnp.concatenate(
        [params["e_f"], params["e_s"], params["e_i"]]).reshape(1, 3 * H).astype(f32)
    W_a = jnp.concatenate(
        [params["W_fa"], params["W_sa"]], axis=1).astype(f32)                  # (H, 2H)
    W_ia = params["W_ia"].astype(f32)
    W_ba = params["W_ba"].astype(f32)
    e_o = params["e_o"].reshape(1, D).astype(f32)

    # Chunking (time) and tiling (batch).
    tc = int(min(time_chunk, T))
    n_chunks = pl.cdiv(T, tc)
    T_pad = n_chunks * tc
    bt = B if batch_tile is None else int(batch_tile)
    assert B % bt == 0, "batch_tile must divide B"
    n_btiles = B // bt

    # Time-major layout so each chunk DMA is a contiguous (tc, B, feat) slab.
    cat_tm = jnp.transpose(catvec, (1, 0, 2))   # (T, B, Dcat)
    at_tm = jnp.transpose(At, (1, 0, 2))        # (T, B, D)
    if T_pad != T:
        pad = [(0, T_pad - T), (0, 0), (0, 0)]
        cat_tm = jnp.pad(cat_tm, pad)
        at_tm = jnp.pad(at_tm, pad)

    def resident(shape):
        # Same block every grid step -> DMA'd once, stays in VMEM.
        return pl.BlockSpec(shape, lambda b, c: (0,) * len(shape))

    in_specs = [
        pl.BlockSpec((tc, bt, Dcat), lambda b, c: (c, b, 0)),   # cat chunk
        pl.BlockSpec((tc, bt, D), lambda b, c: (c, b, 0)),      # At chunk
        resident((Dcat, 3 * H)), resident((1, 3 * H)),          # W_b, e_b
        resident((H, 2 * H)), resident((H, H)),                 # W_a, W_ia
        resident((H, D)), resident((1, D)),                     # W_ba, e_o
    ]

    out_tm = pl.pallas_call(
        _gru_mi_e_chunk_kernel,
        out_shape=jax.ShapeDtypeStruct((T_pad, B, D), f32),
        grid_spec=pltpu.PrefetchScalarGridSpec(
            num_scalar_prefetch=0,
            grid=(n_btiles, n_chunks),
            in_specs=in_specs,
            out_specs=pl.BlockSpec((tc, bt, D), lambda b, c: (c, b, 0)),
            scratch_shapes=[
                pltpu.VMEM((bt, H), f32),            # hidden state carry
                pltpu.VMEM((tc, bt, 3 * H), f32),    # per-chunk gate pre-acts
                pltpu.VMEM((tc, bt, H), f32),        # per-chunk hidden history
            ],
        ),
        compiler_params=pltpu.CompilerParams(
            # batch tiles are independent (v7x megacore), time must stay sequential
            dimension_semantics=("parallel", "arbitrary"),
        ),
    )(cat_tm, at_tm, W_b, e_b, W_a, W_ia, W_ba, e_o)

    return jnp.transpose(out_tm[:T], (1, 0, 2))   # (B, T, D)


def _reference_forward(x, fo, fi, params, discount_mask):
    """Pure-JAX mirror of the PyTorch forward (dropout off), for checking."""
    B, T, D = x.shape
    H = params["W_fa"].shape[0]
    mask_idx = jnp.asarray(np.nonzero(np.asarray(discount_mask))[0], jnp.int32)

    h = jnp.zeros((B, H), jnp.float32)
    preds = []
    for t in range(T):
        xt = x[:, t, :].astype(jnp.float32)
        dit = jnp.take(fi[:, t, 1, :], mask_idx, axis=-1).astype(jnp.float32)
        dot_ = jnp.take(fo[:, t, 1, :], mask_idx, axis=-1).astype(jnp.float32)
        cat = jnp.concatenate([xt, dit], axis=1)
        f = jax.nn.sigmoid(cat @ params["W_fb"] + h @ params["W_fa"] + params["e_f"])
        s = jax.nn.sigmoid(cat @ params["W_sb"] + h @ params["W_sa"] + params["e_s"])
        c = jnp.tanh(cat @ params["W_ib"] + (h * s) @ params["W_ia"] + params["e_i"])
        h = h * (1.0 - f) + f * c
        At = dot_ @ params["E"]
        nb = jax.nn.sigmoid((h @ params["W_ba"]) * (1.0 + At) + params["e_o"])
        preds.append(nb)
    return jnp.stack(preds, axis=1)


if __name__ == "__main__":
    key = jax.random.PRNGKey(0)

    # Small shapes consistent with the module.
    B, T = 2, 8                 # batch, sequence length
    input_dim = 32              # basket / item-vector size
    num_hidden = 32             # GRU hidden size
    F = 16                      # raw discount-feature width of fi / fo
    K = 3                       # fi/fo third axis (index 1 is used)

    discount_mask = np.zeros(F, dtype=bool)
    discount_mask[::2] = True   # discount_dim = 8
    Dd = int(discount_mask.sum())
    Dcat = input_dim + Dd

    keys = jax.random.split(key, 16)
    sc = 0.1
    params = {
        "E":    sc * jax.random.normal(keys[0], (Dd, input_dim), jnp.float32),
        "W_fb": sc * jax.random.normal(keys[1], (Dcat, num_hidden), jnp.float32),
        "W_fa": sc * jax.random.normal(keys[2], (num_hidden, num_hidden), jnp.float32),
        "e_f":  sc * jax.random.normal(keys[3], (num_hidden,), jnp.float32),
        "W_ib": sc * jax.random.normal(keys[4], (Dcat, num_hidden), jnp.float32),
        "W_ia": sc * jax.random.normal(keys[5], (num_hidden, num_hidden), jnp.float32),
        "e_i":  sc * jax.random.normal(keys[6], (num_hidden,), jnp.float32),
        "W_sb": sc * jax.random.normal(keys[7], (Dcat, num_hidden), jnp.float32),
        "W_sa": sc * jax.random.normal(keys[8], (num_hidden, num_hidden), jnp.float32),
        "e_s":  sc * jax.random.normal(keys[9], (num_hidden,), jnp.float32),
        "W_ba": sc * jax.random.normal(keys[10], (num_hidden, input_dim), jnp.float32),
        "e_o":  sc * jax.random.normal(keys[11], (input_dim,), jnp.float32),
    }

    # Binary-ish baskets + random discount features.
    x = (jax.random.uniform(keys[12], (B, T, input_dim)) > 0.5).astype(jnp.float32)
    fo = jax.random.uniform(keys[13], (B, T, K, F), dtype=jnp.float32)
    fi = jax.random.uniform(keys[14], (B, T, K, F), dtype=jnp.float32)

    # time_chunk=4 -> 2 time chunks, exercising the hidden-state carry
    # across grid steps.
    out = basket_gru_mi_e_forward(x, fo, fi, params, discount_mask, time_chunk=4)
    out = jax.block_until_ready(out)

    ref = _reference_forward(x, fo, fi, params, discount_mask)

    assert out.shape == (B, T, input_dim)
    assert out.dtype == jnp.float32
    assert bool(jnp.allclose(out, ref, atol=1e-4, rtol=1e-4))

    print("KERNEL_OK")
</pallas_src>

<mosaic_0001>
module attributes {stable_mosaic.version = 11 : i64} {
  func.func @_gru_mi_e_chunk_kernel(%arg0: i32, %arg1: i32, %arg2: memref<4x2x40xf32, #tpu.memory_space<vmem>>, %arg3: memref<4x2x32xf32, #tpu.memory_space<vmem>>, %arg4: memref<40x96xf32, #tpu.memory_space<vmem>>, %arg5: memref<1x96xf32, #tpu.memory_space<vmem>>, %arg6: memref<32x64xf32, #tpu.memory_space<vmem>>, %arg7: memref<32x32xf32, #tpu.memory_space<vmem>>, %arg8: memref<32x32xf32, #tpu.memory_space<vmem>>, %arg9: memref<1x32xf32, #tpu.memory_space<vmem>>, %arg10: memref<4x2x32xf32, #tpu.memory_space<vmem>>, %arg11: memref<2x32xf32, #tpu.memory_space<vmem>>, %arg12: memref<4x2x96xf32, #tpu.memory_space<vmem>>, %arg13: memref<4x2x32xf32, #tpu.memory_space<vmem>>) attributes {dimension_semantics = [#tpu.dimension_semantics<parallel>, #tpu.dimension_semantics<arbitrary>], iteration_bounds = array<i64: 1, 2>, scalar_prefetch = 0 : i64, scratch_operands = 3 : i64, tpu.core_type = #tpu.core_type<tc>, window_params = [{transform_indices = @transform_0, window_bounds = array<i64: 4, 2, 40>}, {transform_indices = @transform_1, window_bounds = array<i64: 4, 2, 32>}, {pipeline_mode = #tpu.pipeline_mode<synchronous>, transform_indices = @transform_2, window_bounds = array<i64: 40, 96>}, {pipeline_mode = #tpu.pipeline_mode<synchronous>, transform_indices = @transform_3, window_bounds = array<i64: 1, 96>}, {pipeline_mode = #tpu.pipeline_mode<synchronous>, transform_indices = @transform_4, window_bounds = array<i64: 32, 64>}, {pipeline_mode = #tpu.pipeline_mode<synchronous>, transform_indices = @transform_5, window_bounds = array<i64: 32, 32>}, {pipeline_mode = #tpu.pipeline_mode<synchronous>, transform_indices = @transform_6, window_bounds = array<i64: 32, 32>}, {pipeline_mode = #tpu.pipeline_mode<synchronous>, transform_indices = @transform_7, window_bounds = array<i64: 1, 32>}, {transform_indices = @transform_8, window_bounds = array<i64: 4, 2, 32>}]} {
    %c0_i32 = arith.constant 0 : i32
    %0 = arith.cmpi eq, %arg1, %c0_i32 : i32
    %1 = arith.extui %0 : i1 to i32
    %c0_i32_0 = arith.constant 0 : i32
    %2 = arith.cmpi ne, %1, %c0_i32_0 : i32
    scf.if %2 {
      %cst_67 = arith.constant 0.000000e+00 : f32
      %163 = vector.broadcast %cst_67 : f32 to vector<2x32xf32>
      %c0_68 = arith.constant 0 : index
      %c0_69 = arith.constant 0 : index
      %164 = vector.load %arg11[%c0_68, %c0_69] : memref<2x32xf32, #tpu.memory_space<vmem>>, vector<2x32xf32>
      tpu.vector_store %arg11[%c0_68, %c0_69], %163 {strides = array<i32>} : memref<2x32xf32, #tpu.memory_space<vmem>>, vector<2x32xf32>,
    } else {
    }
    %c0 = arith.constant 0 : index
    %c0_1 = arith.constant 0 : index
    %c0_2 = arith.constant 0 : index
    %3 = vector.load %arg2[%c0, %c0_1, %c0_2] : memref<4x2x40xf32, #tpu.memory_space<vmem>>, vector<4x2x40xf32>
    %4 = vector.shape_cast %3 : vector<4x2x40xf32> to vector<8x40xf32>
    %c0_3 = arith.constant 0 : index
    %c0_4 = arith.constant 0 : index
    %5 = vector.load %arg4[%c0_3, %c0_4] : memref<40x96xf32, #tpu.memory_space<vmem>>, vector<40x96xf32>
    %cst = arith.constant dense<0.000000e+00> : vector<8x96xf32>
    %6 = tpu.matmul %4, %5, %cst {dimension_numbers = #tpu.dot_dimension_numbers<[1], [0], [0], [1], [0, 0, 1, 1], [], []>} : vector<8x40xf32>, vector<40x96xf32>, vector<8x96xf32> -> vector<8x96xf32>
    %c0_5 = arith.constant 0 : index
    %c0_6 = arith.constant 0 : index
    %7 = vector.load %arg5[%c0_5, %c0_6] : memref<1x96xf32, #tpu.memory_space<vmem>>, vector<1x96xf32>
    %8 = vector.broadcast %7 : vector<1x96xf32> to vector<8x96xf32>
    %9 = arith.addf %6, %8 : vector<8x96xf32>
    %10 = vector.shape_cast %9 : vector<8x96xf32> to vector<4x2x96xf32>
    %c0_7 = arith.constant 0 : index
    %c0_8 = arith.constant 0 : index
    %c0_9 = arith.constant 0 : index
    %11 = vector.load %arg12[%c0_7, %c0_8, %c0_9] : memref<4x2x96xf32, #tpu.memory_space<vmem>>, vector<4x2x96xf32>
    tpu.vector_store %arg12[%c0_7, %c0_8, %c0_9], %10 {strides = array<i32>} : memref<4x2x96xf32, #tpu.memory_space<vmem>>, vector<4x2x96xf32>,
    %c0_10 = arith.constant 0 : index
    %c0_11 = arith.constant 0 : index
    %12 = vector.load %arg6[%c0_10, %c0_11] : memref<32x64xf32, #tpu.memory_space<vmem>>, vector<32x64xf32>
    %c0_12 = arith.constant 0 : index
    %c0_13 = arith.constant 0 : index
    %13 = vector.load %arg7[%c0_12, %c0_13] : memref<32x32xf32, #tpu.memory_space<vmem>>, vector<32x32xf32>
    %c0_14 = arith.constant 0 : index
    %c0_15 = arith.constant 0 : index
    %14 = vector.load %arg11[%c0_14, %c0_15] : memref<2x32xf32, #tpu.memory_space<vmem>>, vector<2x32xf32>
    %c0_i32_16 = arith.constant 0 : i32
    %15 = arith.index_cast %c0_i32_16 : i32 to index
    %c0_17 = arith.constant 0 : index
    %c0_18 = arith.constant 0 : index
    %16 = vector.load %arg12[%15, %c0_17, %c0_18] : memref<4x2x96xf32, #tpu.memory_space<vmem>>, vector<1x2x96xf32>
    %17 = vector.shape_cast %16 : vector<1x2x96xf32> to vector<2x96xf32>
    %cst_19 = arith.constant dense<0.000000e+00> : vector<2x64xf32>
    %18 = tpu.matmul %14, %12, %cst_19 {dimension_numbers = #tpu.dot_dimension_numbers<[1], [0], [0], [1], [0, 0, 1, 1], [], []>} : vector<2x32xf32>, vector<32x64xf32>, vector<2x64xf32> -> vector<2x64xf32>
    %19 = vector.extract_strided_slice %17 {offsets = [0, 0], sizes = [2, 32], strides = [1, 1]} : vector<2x96xf32> to vector<2x32xf32>
    %20 = vector.extract_strided_slice %18 {offsets = [0, 0], sizes = [2, 32], strides = [1, 1]} : vector<2x64xf32> to vector<2x32xf32>
    %21 = arith.addf %19, %20 : vector<2x32xf32>
    %22 = arith.negf %21 : vector<2x32xf32>
    %23 = math.exp %22 : vector<2x32xf32>
    %cst_20 = arith.constant 1.000000e+00 : f32
    %24 = vector.broadcast %cst_20 : f32 to vector<2x32xf32>
    %25 = arith.addf %24, %23 : vector<2x32xf32>
    %26 = arith.divf %24, %25 : vector<2x32xf32>
    %27 = vector.extract_strided_slice %17 {offsets = [0, 32], sizes = [2, 32], strides = [1, 1]} : vector<2x96xf32> to vector<2x32xf32>
    %28 = vector.extract_strided_slice %18 {offsets = [0, 32], sizes = [2, 32], strides = [1, 1]} : vector<2x64xf32> to vector<2x32xf32>
    %29 = arith.addf %27, %28 : vector<2x32xf32>
    %30 = arith.negf %29 : vector<2x32xf32>
    %31 = math.exp %30 : vector<2x32xf32>
    %cst_21 = arith.constant 1.000000e+00 : f32
    %32 = vector.broadcast %cst_21 : f32 to vector<2x32xf32>
    %33 = arith.addf %32, %31 : vector<2x32xf32>
    %34 = arith.divf %32, %33 : vector<2x32xf32>
    %35 = vector.extract_strided_slice %17 {offsets = [0, 64], sizes = [2, 32], strides = [1, 1]} : vector<2x96xf32> to vector<2x32xf32>
    %36 = arith.mulf %14, %34 : vector<2x32xf32>
    %cst_22 = arith.constant dense<0.000000e+00> : vector<2x32xf32>
    %37 = tpu.matmul %36, %13, %cst_22 {dimension_numbers = #tpu.dot_dimension_numbers<[1], [0], [0], [1], [0, 0, 1, 1], [], []>} : vector<2x32xf32>, vector<32x32xf32>, vector<2x32xf32> -> vector<2x32xf32>
    %38 = arith.addf %35, %37 : vector<2x32xf32>
    %39 = math.tanh %38 : vector<2x32xf32>
    %40 = arith.subf %39, %14 : vector<2x32xf32>
    %41 = arith.mulf %26, %40 : vector<2x32xf32>
    %42 = arith.addf %14, %41 : vector<2x32xf32>
    %43 = arith.index_cast %c0_i32_16 : i32 to index
    %c0_23 = arith.constant 0 : index
    %c0_24 = arith.constant 0 : index
    %44 = vector.load %arg13[%43, %c0_23, %c0_24] : memref<4x2x32xf32, #tpu.memory_space<vmem>>, vector<1x2x32xf32>
    %45 = vector.shape_cast %44 : vector<1x2x32xf32> to vector<2x32xf32>
    %46 = vector.shape_cast %42 : vector<2x32xf32> to vector<1x2x32xf32>
    tpu.vector_store %arg13[%43, %c0_23, %c0_24], %46 {strides = array<i32>} : memref<4x2x32xf32, #tpu.memory_space<vmem>>, vector<1x2x32xf32>,
    %c1_i32 = arith.constant 1 : i32
    %47 = arith.index_cast %c1_i32 : i32 to index
    %c0_25 = arith.constant 0 : index
    %c0_26 = arith.constant 0 : index
    %48 = vector.load %arg12[%47, %c0_25, %c0_26] : memref<4x2x96xf32, #tpu.memory_space<vmem>>, vector<1x2x96xf32>
    %49 = vector.shape_cast %48 : vector<1x2x96xf32> to vector<2x96xf32>
    %cst_27 = arith.constant dense<0.000000e+00> : vector<2x64xf32>
    %50 = tpu.matmul %42, %12, %cst_27 {dimension_numbers = #tpu.dot_dimension_numbers<[1], [0], [0], [1], [0, 0, 1, 1], [], []>} : vector<2x32xf32>, vector<32x64xf32>, vector<2x64xf32> -> vector<2x64xf32>
    %51 = vector.extract_strided_slice %49 {offsets = [0, 0], sizes = [2, 32], strides = [1, 1]} : vector<2x96xf32> to vector<2x32xf32>
    %52 = vector.extract_strided_slice %50 {offsets = [0, 0], sizes = [2, 32], strides = [1, 1]} : vector<2x64xf32> to vector<2x32xf32>
    %53 = arith.addf %51, %52 : vector<2x32xf32>
    %54 = arith.negf %53 : vector<2x32xf32>
    %55 = math.exp %54 : vector<2x32xf32>
    %cst_28 = arith.constant 1.000000e+00 : f32
    %56 = vector.broadcast %cst_28 : f32 to vector<2x32xf32>
    %57 = arith.addf %56, %55 : vector<2x32xf32>
    %58 = arith.divf %56, %57 : vector<2x32xf32>
    %59 = vector.extract_strided_slice %49 {offsets = [0, 32], sizes = [2, 32], strides = [1, 1]} : vector<2x96xf32> to vector<2x32xf32>
    %60 = vector.extract_strided_slice %50 {offsets = [0, 32], sizes = [2, 32], strides = [1, 1]} : vector<2x64xf32> to vector<2x32xf32>
    %61 = arith.addf %59, %60 : vector<2x32xf32>
    %62 = arith.negf %61 : vector<2x32xf32>
    %63 = math.exp %62 : vector<2x32xf32>
    %cst_29 = arith.constant 1.000000e+00 : f32
    %64 = vector.broadcast %cst_29 : f32 to vector<2x32xf32>
    %65 = arith.addf %64, %63 : vector<2x32xf32>
    %66 = arith.divf %64, %65 : vector<2x32xf32>
    %67 = vector.extract_strided_slice %49 {offsets = [0, 64], sizes = [2, 32], strides = [1, 1]} : vector<2x96xf32> to vector<2x32xf32>
    %68 = arith.mulf %42, %66 : vector<2x32xf32>
    %cst_30 = arith.constant dense<0.000000e+00> : vector<2x32xf32>
    %69 = tpu.matmul %68, %13, %cst_30 {dimension_numbers = #tpu.dot_dimension_numbers<[1], [0], [0], [1], [0, 0, 1, 1], [], []>} : vector<2x32xf32>, vector<32x32xf32>, vector<2x32xf32> -> vector<2x32xf32>
    %70 = arith.addf %67, %69 : vector<2x32xf32>
    %71 = math.tanh %70 : vector<2x32xf32>
    %72 = arith.subf %71, %42 : vector<2x32xf32>
    %73 = arith.mulf %58, %72 : vector<2x32xf32>
    %74 = arith.addf %42, %73 : vector<2x32xf32>
    %75 = arith.index_cast %c1_i32 : i32 to index
    %c0_31 = arith.constant 0 : index
    %c0_32 = arith.constant 0 : index
    %76 = vector.load %arg13[%75, %c0_31, %c0_32] : memref<4x2x32xf32, #tpu.memory_space<vmem>>, vector<1x2x32xf32>
    %77 = vector.shape_cast %76 : vector<1x2x32xf32> to vector<2x32xf32>
    %78 = vector.shape_cast %74 : vector<2x32xf32> to vector<1x2x32xf32>
    tpu.vector_store %arg13[%75, %c0_31, %c0_32], %78 {strides = array<i32>} : memref<4x2x32xf32, #tpu.memory_space<vmem>>, vector<1x2x32xf32>,
    %c2_i32 = arith.constant 2 : i32
    %79 = arith.index_cast %c2_i32 : i32 to index
    %c0_33 = arith.constant 0 : index
    %c0_34 = arith.constant 0 : index
    %80 = vector.load %arg12[%79, %c0_33, %c0_34] : memref<4x2x96xf32, #tpu.memory_space<vmem>>, vector<1x2x96xf32>
    %81 = vector.shape_cast %80 : vector<1x2x96xf32> to vector<2x96xf32>
    %cst_35 = arith.constant dense<0.000000e+00> : vector<2x64xf32>
    %82 = tpu.matmul %74, %12, %cst_35 {dimension_numbers = #tpu.dot_dimension_numbers<[1], [0], [0], [1], [0, 0, 1, 1], [], []>} : vector<2x32xf32>, vector<32x64xf32>, vector<2x64xf32> -> vector<2x64xf32>
    %83 = vector.extract_strided_slice %81 {offsets = [0, 0], sizes = [2, 32], strides = [1, 1]} : vector<2x96xf32> to vector<2x32xf32>
    %84 = vector.extract_strided_slice %82 {offsets = [0, 0], sizes = [2, 32], strides = [1, 1]} : vector<2x64xf32> to vector<2x32xf32>
    %85 = arith.addf %83, %84 : vector<2x32xf32>
    %86 = arith.negf %85 : vector<2x32xf32>
    %87 = math.exp %86 : vector<2x32xf32>
    %cst_36 = arith.constant 1.000000e+00 : f32
    %88 = vector.broadcast %cst_36 : f32 to vector<2x32xf32>
    %89 = arith.addf %88, %87 : vector<2x32xf32>
    %90 = arith.divf %88, %89 : vector<2x32xf32>
    %91 = vector.extract_strided_slice %81 {offsets = [0, 32], sizes = [2, 32], strides = [1, 1]} : vector<2x96xf32> to vector<2x32xf32>
    %92 = vector.extract_strided_slice %82 {offsets = [0, 32], sizes = [2, 32], strides = [1, 1]} : vector<2x64xf32> to vector<2x32xf32>
    %93 = arith.addf %91, %92 : vector<2x32xf32>
    %94 = arith.negf %93 : vector<2x32xf32>
    %95 = math.exp %94 : vector<2x32xf32>
    %cst_37 = arith.constant 1.000000e+00 : f32
    %96 = vector.broadcast %cst_37 : f32 to vector<2x32xf32>
    %97 = arith.addf %96, %95 : vector<2x32xf32>
    %98 = arith.divf %96, %97 : vector<2x32xf32>
    %99 = vector.extract_strided_slice %81 {offsets = [0, 64], sizes = [2, 32], strides = [1, 1]} : vector<2x96xf32> to vector<2x32xf32>
    %100 = arith.mulf %74, %98 : vector<2x32xf32>
    %cst_38 = arith.constant dense<0.000000e+00> : vector<2x32xf32>
    %101 = tpu.matmul %100, %13, %cst_38 {dimension_numbers = #tpu.dot_dimension_numbers<[1], [0], [0], [1], [0, 0, 1, 1], [], []>} : vector<2x32xf32>, vector<32x32xf32>, vector<2x32xf32> -> vector<2x32xf32>
    %102 = arith.addf %99, %101 : vector<2x32xf32>
    %103 = math.tanh %102 : vector<2x32xf32>
    %104 = arith.subf %103, %74 : vector<2x32xf32>
    %105 = arith.mulf %90, %104 : vector<2x32xf32>
    %106 = arith.addf %74, %105 : vector<2x32xf32>
    %107 = arith.index_cast %c2_i32 : i32 to index
    %c0_39 = arith.constant 0 : index
    %c0_40 = arith.constant 0 : index
    %108 = vector.load %arg13[%107, %c0_39, %c0_40] : memref<4x2x32xf32, #tpu.memory_space<vmem>>, vector<1x2x32xf32>
    %109 = vector.shape_cast %108 : vector<1x2x32xf32> to vector<2x32xf32>
    %110 = vector.shape_cast %106 : vector<2x32xf32> to vector<1x2x32xf32>
    tpu.vector_store %arg13[%107, %c0_39, %c0_40], %110 {strides = array<i32>} : memref<4x2x32xf32, #tpu.memory_space<vmem>>, vector<1x2x32xf32>,
    %c3_i32 = arith.constant 3 : i32
    %111 = arith.index_cast %c3_i32 : i32 to index
    %c0_41 = arith.constant 0 : index
    %c0_42 = arith.constant 0 : index
    %112 = vector.load %arg12[%111, %c0_41, %c0_42] : memref<4x2x96xf32, #tpu.memory_space<vmem>>, vector<1x2x96xf32>
    %113 = vector.shape_cast %112 : vector<1x2x96xf32> to vector<2x96xf32>
    %cst_43 = arith.constant dense<0.000000e+00> : vector<2x64xf32>
    %114 = tpu.matmul %106, %12, %cst_43 {dimension_numbers = #tpu.dot_dimension_numbers<[1], [0], [0], [1], [0, 0, 1, 1], [], []>} : vector<2x32xf32>, vector<32x64xf32>, vector<2x64xf32> -> vector<2x64xf32>
    %115 = vector.extract_strided_slice %113 {offsets = [0, 0], sizes = [2, 32], strides = [1, 1]} : vector<2x96xf32> to vector<2x32xf32>
    %116 = vector.extract_strided_slice %114 {offsets = [0, 0], sizes = [2, 32], strides = [1, 1]} : vector<2x64xf32> to vector<2x32xf32>
    %117 = arith.addf %115, %116 : vector<2x32xf32>
    %118 = arith.negf %117 : vector<2x32xf32>
    %119 = math.exp %118 : vector<2x32xf32>
    %cst_44 = arith.constant 1.000000e+00 : f32
    %120 = vector.broadcast %cst_44 : f32 to vector<2x32xf32>
    %121 = arith.addf %120, %119 : vector<2x32xf32>
    %122 = arith.divf %120, %121 : vector<2x32xf32>
    %123 = vector.extract_strided_slice %113 {offsets = [0, 32], sizes = [2, 32], strides = [1, 1]} : vector<2x96xf32> to vector<2x32xf32>
    %124 = vector.extract_strided_slice %114 {offsets = [0, 32], sizes = [2, 32], strides = [1, 1]} : vector<2x64xf32> to vector<2x32xf32>
    %125 = arith.addf %123, %124 : vector<2x32xf32>
    %126 = arith.negf %125 : vector<2x32xf32>
    %127 = math.exp %126 : vector<2x32xf32>
    %cst_45 = arith.constant 1.000000e+00 : f32
    %128 = vector.broadcast %cst_45 : f32 to vector<2x32xf32>
    %129 = arith.addf %128, %127 : vector<2x32xf32>
    %130 = arith.divf %128, %129 : vector<2x32xf32>
    %131 = vector.extract_strided_slice %113 {offsets = [0, 64], sizes = [2, 32], strides = [1, 1]} : vector<2x96xf32> to vector<2x32xf32>
    %132 = arith.mulf %106, %130 : vector<2x32xf32>
    %cst_46 = arith.constant dense<0.000000e+00> : vector<2x32xf32>
    %133 = tpu.matmul %132, %13, %cst_46 {dimension_numbers = #tpu.dot_dimension_numbers<[1], [0], [0], [1], [0, 0, 1, 1], [], []>} : vector<2x32xf32>, vector<32x32xf32>, vector<2x32xf32> -> vector<2x32xf32>
    %134 = arith.addf %131, %133 : vector<2x32xf32>
    %135 = math.tanh %134 : vector<2x32xf32>
    %136 = arith.subf %135, %106 : vector<2x32xf32>
    %137 = arith.mulf %122, %136 : vector<2x32xf32>
    %138 = arith.addf %106, %137 : vector<2x32xf32>
    %139 = arith.index_cast %c3_i32 : i32 to index
    %c0_47 = arith.constant 0 : index
    %c0_48 = arith.constant 0 : index
    %140 = vector.load %arg13[%139, %c0_47, %c0_48] : memref<4x2x32xf32, #tpu.memory_space<vmem>>, vector<1x2x32xf32>
    %141 = vector.shape_cast %140 : vector<1x2x32xf32> to vector<2x32xf32>
    %142 = vector.shape_cast %138 : vector<2x32xf32> to vector<1x2x32xf32>
    tpu.vector_store %arg13[%139, %c0_47, %c0_48], %142 {strides = array<i32>} : memref<4x2x32xf32, #tpu.memory_space<vmem>>, vector<1x2x32xf32>,
    %c4_i32 = arith.constant 4 : i32
    %c0_49 = arith.constant 0 : index
    %c0_50 = arith.constant 0 : index
    %143 = vector.load %arg11[%c0_49, %c0_50] : memref<2x32xf32, #tpu.memory_space<vmem>>, vector<2x32xf32>
    tpu.vector_store %arg11[%c0_49, %c0_50], %138 {strides = array<i32>} : memref<2x32xf32, #tpu.memory_space<vmem>>, vector<2x32xf32>,
    %c0_51 = arith.constant 0 : index
    %c0_52 = arith.constant 0 : index
    %c0_53 = arith.constant 0 : index
    %144 = vector.load %arg13[%c0_51, %c0_52, %c0_53] : memref<4x2x32xf32, #tpu.memory_space<vmem>>, vector<4x2x32xf32>
    %145 = vector.shape_cast %144 : vector<4x2x32xf32> to vector<8x32xf32>
    %c0_54 = arith.constant 0 : index
    %c0_55 = arith.constant 0 : index
    %146 = vector.load %arg8[%c0_54, %c0_55] : memref<32x32xf32, #tpu.memory_space<vmem>>, vector<32x32xf32>
    %cst_56 = arith.constant dense<0.000000e+00> : vector<8x32xf32>
    %147 = tpu.matmul %145, %146, %cst_56 {dimension_numbers = #tpu.dot_dimension_numbers<[1], [0], [0], [1], [0, 0, 1, 1], [], []>} : vector<8x32xf32>, vector<32x32xf32>, vector<8x32xf32> -> vector<8x32xf32>
    %148 = vector.shape_cast %147 : vector<8x32xf32> to vector<4x2x32xf32>
    %c0_57 = arith.constant 0 : index
    %c0_58 = arith.constant 0 : index
    %c0_59 = arith.constant 0 : index
    %149 = vector.load %arg3[%c0_57, %c0_58, %c0_59] : memref<4x2x32xf32, #tpu.memory_space<vmem>>, vector<4x2x32xf32>
    %cst_60 = arith.constant 1.000000e+00 : f32
    %150 = vector.broadcast %cst_60 : f32 to vector<4x2x32xf32>
    %151 = arith.addf %150, %149 : vector<4x2x32xf32>
    %152 = arith.mulf %148, %151 : vector<4x2x32xf32>
    %c0_61 = arith.constant 0 : index
    %c0_62 = arith.constant 0 : index
    %153 = vector.load %arg9[%c0_61, %c0_62] : memref<1x32xf32, #tpu.memory_space<vmem>>, vector<1x32xf32>
    %154 = vector.shape_cast %153 : vector<1x32xf32> to vector<1x1x32xf32>
    %155 = vector.broadcast %154 : vector<1x1x32xf32> to vector<4x2x32xf32>
    %156 = arith.addf %152, %155 : vector<4x2x32xf32>
    %157 = arith.negf %156 : vector<4x2x32xf32>
    %158 = math.exp %157 : vector<4x2x32xf32>
    %cst_63 = arith.constant 1.000000e+00 : f32
    %159 = vector.broadcast %cst_63 : f32 to vector<4x2x32xf32>
    %160 = arith.addf %159, %158 : vector<4x2x32xf32>
    %161 = arith.divf %159, %160 : vector<4x2x32xf32>
    %c0_64 = arith.constant 0 : index
    %c0_65 = arith.constant 0 : index
    %c0_66 = arith.constant 0 : index
    %162 = vector.load %arg10[%c0_64, %c0_65, %c0_66] : memref<4x2x32xf32, #tpu.memory_space<vmem>>, vector<4x2x32xf32>
    tpu.vector_store %arg10[%c0_64, %c0_65, %c0_66], %161 {strides = array<i32>} : memref<4x2x32xf32, #tpu.memory_space<vmem>>, vector<4x2x32xf32>,
    return
  }
  func.func @transform_0(%arg0: i32, %arg1: i32) -> (i32, i32, i32) {
    %c0_i32 = arith.constant 0 : i32
    %c0_i32_0 = arith.constant 0 : i32
    return %arg1, %arg0, %c0_i32 : i32, i32, i32
  }
  func.func @transform_1(%arg0: i32, %arg1: i32) -> (i32, i32, i32) {
    %c0_i32 = arith.constant 0 : i32
    %c0_i32_0 = arith.constant 0 : i32
    return %arg1, %arg0, %c0_i32 : i32, i32, i32
  }
  func.func @transform_2(%arg0: i32, %arg1: i32) -> (i32, i32) {
    %c0_i32 = arith.constant 0 : i32
    %c0_i32_0 = arith.constant 0 : i32
    %c0_i32_1 = arith.constant 0 : i32
    return %c0_i32, %c0_i32_0 : i32, i32
  }
  func.func @transform_3(%arg0: i32, %arg1: i32) -> (i32, i32) {
    %c0_i32 = arith.constant 0 : i32
    %c0_i32_0 = arith.constant 0 : i32
    %c0_i32_1 = arith.constant 0 : i32
    return %c0_i32, %c0_i32_0 : i32, i32
  }
  func.func @transform_4(%arg0: i32, %arg1: i32) -> (i32, i32) {
    %c0_i32 = arith.constant 0 : i32
    %c0_i32_0 = arith.constant 0 : i32
    %c0_i32_1 = arith.constant 0 : i32
    return %c0_i32, %c0_i32_0 : i32, i32
  }
  func.func @transform_5(%arg0: i32, %arg1: i32) -> (i32, i32) {
    %c0_i32 = arith.constant 0 : i32
    %c0_i32_0 = arith.constant 0 : i32
    %c0_i32_1 = arith.constant 0 : i32
    return %c0_i32, %c0_i32_0 : i32, i32
  }
  func.func @transform_6(%arg0: i32, %arg1: i32) -> (i32, i32) {
    %c0_i32 = arith.constant 0 : i32
    %c0_i32_0 = arith.constant 0 : i32
    %c0_i32_1 = arith.constant 0 : i32
    return %c0_i32, %c0_i32_0 : i32, i32
  }
  func.func @transform_7(%arg0: i32, %arg1: i32) -> (i32, i32) {
    %c0_i32 = arith.constant 0 : i32
    %c0_i32_0 = arith.constant 0 : i32
    %c0_i32_1 = arith.constant 0 : i32
    return %c0_i32, %c0_i32_0 : i32, i32
  }
  func.func @transform_8(%arg0: i32, %arg1: i32) -> (i32, i32, i32) {
    %c0_i32 = arith.constant 0 : i32
    %c0_i32_0 = arith.constant 0 : i32
    return %arg1, %arg0, %c0_i32 : i32, i32, i32
  }
}

</mosaic_0001>

<llo_original>
// kernel: tpu_custom_call.1
$region0: #{tpu_custom_call.1}
  #allocation0 [shape = 'u32[]', space=smem, size = 0x4, offset = 0x4, fixed_abs, tag = 'smem constant byte address 0x4 - core index']
  #allocation1 [shape = 'u32[144,128]{1,0:T(1,128)}', space=vmem, size = 0x12000, scoped, tag = 'internal scratch']
  #allocation2 [shape = 'f32[2,32]{1,0:T(2,128)}', space=vmem, size = 0x400, scoped, tag = 'scratch operand']
  #allocation3 [shape = 'f32[4,2,96]{2,1,0:T(2,128)}', space=vmem, size = 0x1000, scoped, tag = 'scratch operand']
  #allocation4 [shape = 'f32[4,2,32]{2,1,0:T(2,128)}', space=vmem, size = 0x1000, scoped, tag = 'scratch operand']
  %s0 = inlined_call_operand.hbm [shape: f32[8,2,40], index: 0, kind: input, shape index: {}]
  %s1 = inlined_call_operand.hbm [shape: f32[8,2,32], index: 1, kind: input, shape index: {}]
  %s2 = inlined_call_operand.hbm [shape: f32[40,96], index: 2, kind: input, shape index: {}]
  %s3 = inlined_call_operand.vmem [shape: f32[1,96], index: 3, kind: input, shape index: {}]
  %s4 = inlined_call_operand.hbm [shape: f32[32,64], index: 4, kind: input, shape index: {}]
  %s5 = inlined_call_operand.hbm [shape: f32[32,32], index: 5, kind: input, shape index: {}]
  %s6 = inlined_call_operand.hbm [shape: f32[32,32], index: 6, kind: input, shape index: {}]
  %s7 = inlined_call_operand.vmem [shape: f32[1,32], index: 7, kind: input, shape index: {}]
  %s8 = inlined_call_operand.hbm [shape: f32[8,2,32], index: 8, kind: output, shape index: {}]
  %s9 = sld [smem:[#allocation0]]
  $region93: #{tpu_custom_call.1} parent=0
    _
  %s11 = ssub.s32 1, %s9
  %s12 = scalar_select 0, %s11, %s9
  $region1: #{tpu_custom_call.1} parent=0
    #allocation5 [shape = 'u8[8192]{0}', space=vmem, size = 0x2000, scoped, tag = 'input window, operand 0']
    #allocation6 [shape = 's32[2]{0}', space=sflag, size = 0x8, scoped, tag = 'scoped memory for tpu_custom_call.1']
    #allocation7 [shape = 's32[2]{0}', space=sflag, size = 0x8, scoped, tag = 'scoped memory for tpu_custom_call.1']
    #allocation8 [shape = 'u8[8192]{0}', space=vmem, size = 0x2000, scoped, tag = 'input window, operand 1']
    #allocation9 [shape = 's32[2]{0}', space=sflag, size = 0x8, scoped, tag = 'scoped memory for tpu_custom_call.1']
    #allocation10 [shape = 'u8[20480]{0}', space=vmem, size = 0x5000, scoped, tag = 'input window, operand 2, single buffered']
    #allocation11 [shape = 'u8[16384]{0}', space=vmem, size = 0x4000, scoped, tag = 'input window, operand 4, single buffered']
    #allocation12 [shape = 's32[1]{0}', space=sflag, size = 0x4, scoped, tag = 'scoped memory for tpu_custom_call.1']
    #allocation13 [shape = 'u8[16384]{0}', space=vmem, size = 0x4000, scoped, tag = 'input window, operand 5, single buffered']
    #allocation14 [shape = 'u8[16384]{0}', space=vmem, size = 0x4000, scoped, tag = 'input window, operand 6, single buffered']
    #allocation15 [shape = 's32[1]{0}', space=sflag, size = 0x4, scoped, tag = 'scoped memory for tpu_custom_call.1']
    #allocation16 [shape = 'u8[8192]{0}', space=vmem, size = 0x2000, scoped, tag = 'output window, operand 0']
    %13 = vsyncpa [#allocation6], 0
    %s14 = scalar_lea.sflag [#allocation6], 1
    %15 = vsyncpa %s14, 0
    %16 = vsyncpa [#allocation9], 0
    %s17 = scalar_lea.sflag [#allocation9], 1
    %18 = vsyncpa %s17, 0
    %19 = vsyncpa [#allocation12], 0
    %20 = vsyncpa [#allocation15], 0
    %21 = vsyncpa [#allocation7], 0
    %s22 = scalar_lea.sflag [#allocation7], 1
    %23 = vsyncpa %s22, 0
    loop: start=0, step=1, limit=4
    $region2: #{tpu_custom_call.1} parent=1 // loop_pre_header
      _
    $region3: #{tpu_custom_call.1} parent=1 // loop_header
      %s25 = sphi 0, %s29
      %p26 = scmp.ge.s32.totalorder %s25, 4
      %s32 = sphi 0, %s44
      %s33 = sphi 0, %s40
      %s34 = sphi 0, %s32
      %s35 = sphi 0, %s33
      %s36 = sphi 0, %s34
      %s37 = sphi 0, %s35
      %s49 = sphi 0, %s51
      %s52 = sphi 0, %s49
      %s53 = sphi 0, %s52
      %s69 = sphi 0, %s53
      %s77 = sphi 0, %s79
      %s80 = sphi 0, %s77
      %s81 = sphi 0, %s80
      %s97 = sphi 0, %s81
      %s101 = sphi 0, %s101
      %s103 = sphi 0, %s101
      %s104 = sphi 0, %s103
      %s118 = sphi 0, %s104
      %s122 = sphi 0, %s122
      %s124 = sphi 0, %s122
      %s125 = sphi 0, %s124
      %s139 = sphi 0, %s125
      %s143 = sphi 0, %s143
      %s145 = sphi 0, %s143
      %s146 = sphi 0, %s145
      %s160 = sphi 0, %s146
      %s164 = sphi 0, %s164
      %s166 = sphi 0, %s164
      %s167 = sphi 0, %s166
      %s181 = sphi 0, %s167
      %s185 = sphi 0, %s185
      %s187 = sphi 0, %s185
      %s188 = sphi 0, %s187
      %s202 = sphi 0, %s188
      %s206 = sphi 0, %s206
      %s208 = sphi 0, %s206
      %s209 = sphi 0, %s208
      %s223 = sphi 0, %s209
      %s231 = sphi 0, %s233
      %s234 = sphi 0, %s231
      %s235 = sphi 0, %s234
      %s251 = sphi 0, %s235
    $region4: #{tpu_custom_call.1} parent=1 // loop_header_branch
      %28 = sbr.rel (%p26) target = $region8
    $region5: #{tpu_custom_call.1} parent=1 // loop_body
      %s30 = ssub.s32 %s25, 1
      %s31 = ssub.s32 %s25, 2
      %s38 = sadd.s32 1, %s33
      %p39 = scmp.ge.s32.totalorder %s38, 2
      %s40 = scalar_select %p39, 0, %s38
      %s41 = sadd.s32 1, %s32
      %s42 = scalar_select %p39, %s41, %s32
      %p43 = scmp.ge.s32.totalorder %s42, 1
      %s44 = scalar_select %p43, 0, %s42
      %s45 = ssub.s32 %s33, %s40
      %s46 = ssub.s32 %s32, %s44
      %s47 = sor.u32 %s45, %s46
      %p48 = scmp.eq.s32.totalorder %s47, 0
      %s50 = sadd.s32 %s49, 1
      %s51 = scalar_select %p48, %s49, %s50
      %p54 = pneg %p48
      %p55 = scmp.eq.s32.totalorder %s25, 1
      %p56 = por %p54, %p55
      %p57 = scmp.ne.s32.totalorder %s49, %s52
      %p58 = scmp.eq.s32.totalorder %s25, 0
      %p59 = por %p57, %p58
      %p60 = scmp.ne.s32.totalorder %s49, %s52
      %p61 = scmp.eq.s32.totalorder %s30, 1
      %p62 = por %p60, %p61
      %p63 = scmp.ne.s32.totalorder %s52, %s53
      %p64 = scmp.eq.s32.totalorder %s30, 0
      %p65 = por %p63, %p64
      %p66 = scmp.ne.s32.totalorder %s52, %s53
      %p67 = scmp.eq.s32.totalorder %s31, 1
      %p68 = por %p66, %p67
      %p70 = scmp.ne.s32.totalorder %s53, %s69
      %p71 = scmp.eq.s32.totalorder %s31, 0
      %p72 = por %p70, %p71
      %s73 = ssub.s32 %s33, %s40
      %s74 = ssub.s32 %s32, %s44
      %s75 = sor.u32 %s73, %s74
      %p76 = scmp.eq.s32.totalorder %s75, 0
      %s78 = sadd.s32 %s77, 1
      %s79 = scalar_select %p76, %s77, %s78
      %p82 = pneg %p76
      %p83 = scmp.eq.s32.totalorder %s25, 1
      %p84 = por %p82, %p83
      %p85 = scmp.ne.s32.totalorder %s77, %s80
      %p86 = scmp.eq.s32.totalorder %s25, 0
      %p87 = por %p85, %p86
      %p88 = scmp.ne.s32.totalorder %s77, %s80
      %p89 = scmp.eq.s32.totalorder %s30, 1
      %p90 = por %p88, %p89
      %p91 = scmp.ne.s32.totalorder %s80, %s81
      %p92 = scmp.eq.s32.totalorder %s30, 0
      %p93 = por %p91, %p92
      %p94 = scmp.ne.s32.totalorder %s80, %s81
      %p95 = scmp.eq.s32.totalorder %s31, 1
      %p96 = por %p94, %p95
      %p98 = scmp.ne.s32.totalorder %s81, %s97
      %p99 = scmp.eq.s32.totalorder %s31, 0
      %p100 = por %p98, %p99
      %s102 = sadd.s32 %s101, 1
      %p105 = scmp.eq.s32.totalorder %s25, 1
      %p106 = scmp.ne.s32.totalorder %s101, %s103
      %p107 = scmp.eq.s32.totalorder %s25, 0
      %p108 = por %p106, %p107
      %p109 = scmp.ne.s32.totalorder %s101, %s103
      %p110 = scmp.eq.s32.totalorder %s30, 1
      %p111 = por %p109, %p110
      %p112 = scmp.ne.s32.totalorder %s103, %s104
      %p113 = scmp.eq.s32.totalorder %s30, 0
      %p114 = por %p112, %p113
      %p115 = scmp.ne.s32.totalorder %s103, %s104
      %p116 = scmp.eq.s32.totalorder %s31, 1
      %p117 = por %p115, %p116
      %p119 = scmp.ne.s32.totalorder %s104, %s118
      %p120 = scmp.eq.s32.totalorder %s31, 0
      %p121 = por %p119, %p120
      %s123 = sadd.s32 %s122, 1
      %p126 = scmp.eq.s32.totalorder %s25, 1
      %p127 = scmp.ne.s32.totalorder %s122, %s124
      %p128 = scmp.eq.s32.totalorder %s25, 0
      %p129 = por %p127, %p128
      %p130 = scmp.ne.s32.totalorder %s122, %s124
      %p131 = scmp.eq.s32.totalorder %s30, 1
      %p132 = por %p130, %p131
      %p133 = scmp.ne.s32.totalorder %s124, %s125
      %p134 = scmp.eq.s32.totalorder %s30, 0
      %p135 = por %p133, %p134
      %p136 = scmp.ne.s32.totalorder %s124, %s125
      %p137 = scmp.eq.s32.totalorder %s31, 1
      %p138 = por %p136, %p137
      %p140 = scmp.ne.s32.totalorder %s125, %s139
      %p141 = scmp.eq.s32.totalorder %s31, 0
      %p142 = por %p140, %p141
      %s144 = sadd.s32 %s143, 1
      %p147 = scmp.eq.s32.totalorder %s25, 1
      %p148 = scmp.ne.s32.totalorder %s143, %s145
      %p149 = scmp.eq.s32.totalorder %s25, 0
      %p150 = por %p148, %p149
      %p151 = scmp.ne.s32.totalorder %s143, %s145
      %p152 = scmp.eq.s32.totalorder %s30, 1
      %p153 = por %p151, %p152
      %p154 = scmp.ne.s32.totalorder %s145, %s146
      %p155 = scmp.eq.s32.totalorder %s30, 0
      %p156 = por %p154, %p155
      %p157 = scmp.ne.s32.totalorder %s145, %s146
      %p158 = scmp.eq.s32.totalorder %s31, 1
      %p159 = por %p157, %p158
      %p161 = scmp.ne.s32.totalorder %s146, %s160
      %p162 = scmp.eq.s32.totalorder %s31, 0
      %p163 = por %p161, %p162
      %s165 = sadd.s32 %s164, 1
      %p168 = scmp.eq.s32.totalorder %s25, 1
      %p169 = scmp.ne.s32.totalorder %s164, %s166
      %p170 = scmp.eq.s32.totalorder %s25, 0
      %p171 = por %p169, %p170
      %p172 = scmp.ne.s32.totalorder %s164, %s166
      %p173 = scmp.eq.s32.totalorder %s30, 1
      %p174 = por %p172, %p173
      %p175 = scmp.ne.s32.totalorder %s166, %s167
      %p176 = scmp.eq.s32.totalorder %s30, 0
      %p177 = por %p175, %p176
      %p178 = scmp.ne.s32.totalorder %s166, %s167
      %p179 = scmp.eq.s32.totalorder %s31, 1
      %p180 = por %p178, %p179
      %p182 = scmp.ne.s32.totalorder %s167, %s181
      %p183 = scmp.eq.s32.totalorder %s31, 0
      %p184 = por %p182, %p183
      %s186 = sadd.s32 %s185, 1
      %p189 = scmp.eq.s32.totalorder %s25, 1
      %p190 = scmp.ne.s32.totalorder %s185, %s187
      %p191 = scmp.eq.s32.totalorder %s25, 0
      %p192 = por %p190, %p191
      %p193 = scmp.ne.s32.totalorder %s185, %s187
      %p194 = scmp.eq.s32.totalorder %s30, 1
      %p195 = por %p193, %p194
      %p196 = scmp.ne.s32.totalorder %s187, %s188
      %p197 = scmp.eq.s32.totalorder %s30, 0
      %p198 = por %p196, %p197
      %p199 = scmp.ne.s32.totalorder %s187, %s188
      %p200 = scmp.eq.s32.totalorder %s31, 1
      %p201 = por %p199, %p200
      %p203 = scmp.ne.s32.totalorder %s188, %s202
      %p204 = scmp.eq.s32.totalorder %s31, 0
      %p205 = por %p203, %p204
      %s207 = sadd.s32 %s206, 1
      %p210 = scmp.eq.s32.totalorder %s25, 1
      %p211 = scmp.ne.s32.totalorder %s206, %s208
      %p212 = scmp.eq.s32.totalorder %s25, 0
      %p213 = por %p211, %p212
      %p214 = scmp.ne.s32.totalorder %s206, %s208
      %p215 = scmp.eq.s32.totalorder %s30, 1
      %p216 = por %p214, %p215
      %p217 = scmp.ne.s32.totalorder %s208, %s209
      %p218 = scmp.eq.s32.totalorder %s30, 0
      %p219 = por %p217, %p218
      %p220 = scmp.ne.s32.totalorder %s208, %s209
      %p221 = scmp.eq.s32.totalorder %s31, 1
      %p222 = por %p220, %p221
      %p224 = scmp.ne.s32.totalorder %s209, %s223
      %p225 = scmp.eq.s32.totalorder %s31, 0
      %p226 = por %p224, %p225
      %s227 = ssub.s32 %s33, %s40
      %s228 = ssub.s32 %s32, %s44
      %s229 = sor.u32 %s227, %s228
      %p230 = scmp.eq.s32.totalorder %s229, 0
      %s232 = sadd.s32 %s231, 1
      %s233 = scalar_select %p230, %s231, %s232
      %p236 = pneg %p230
      %p237 = scmp.eq.s32.totalorder %s25, 1
      %p238 = por %p236, %p237
      %p239 = scmp.ne.s32.totalorder %s231, %s234
      %p240 = scmp.eq.s32.totalorder %s25, 0
      %p241 = por %p239, %p240
      %p242 = scmp.ne.s32.totalorder %s231, %s234
      %p243 = scmp.eq.s32.totalorder %s30, 1
      %p244 = por %p242, %p243
      %p245 = scmp.ne.s32.totalorder %s234, %s235
      %p246 = scmp.eq.s32.totalorder %s30, 0
      %p247 = por %p245, %p246
      %p248 = scmp.ne.s32.totalorder %s234, %s235
      %p249 = scmp.eq.s32.totalorder %s31, 1
      %p250 = por %p248, %p249
      %p252 = scmp.ne.s32.totalorder %s235, %s251
      %p253 = scmp.eq.s32.totalorder %s31, 0
      %p254 = por %p252, %p253
      %p255 = scmp.le.s32.totalorder 1, %s25
      %p256 = scmp.lt.s32.totalorder %s25, 3
      %p257 = pnand %p255, %p256
      %p258 = pneg %p257
      // Predicated region
      $region9: #{tpu_custom_call.1} parent=5 // pred_check
        _
      $region10: #{tpu_custom_call.1} parent=5 // pred_check_branch
        %260 = sbr.rel (%p257) target = $region12
      $region11: #{tpu_custom_call.1} parent=5 // pred_region
        %s261 = ssub.s32 %s25, 1
        // Predicated region
        $region13: #{tpu_custom_call.1} parent=11 // pred_check
          %p262 = pneg %p114
        $region14: #{tpu_custom_call.1} parent=11 // pred_check_branch
          %264 = sbr.rel (%p262) target = $region16
        $region15: #{tpu_custom_call.1} parent=11 // pred_region
          %s266 = ssub.s32 640, 640
          %267 = vsyncadd [#allocation9], %s266
          %s268 = sshll.u32 [#allocation10], 4
          %s269 = int_to_ptr.vmem [resolvable:$true] %s268
          %274 = dma.hbm_to_vmem [thread:$0]  %s2, 640, %s269, [#allocation9], 128, 128, 8
        $region16: #{tpu_custom_call.1} parent=11 // pred_fallthru
          _
        // Predicated region
        $region17: #{tpu_custom_call.1} parent=11 // pred_check
          %p275 = pneg %p135
        $region18: #{tpu_custom_call.1} parent=11 // pred_check_branch
          %277 = sbr.rel (%p275) target = $region20
        $region19: #{tpu_custom_call.1} parent=11 // pred_region
          _
        $region20: #{tpu_custom_call.1} parent=11 // pred_fallthru
          _
        // Predicated region
        $region21: #{tpu_custom_call.1} parent=11 // pred_check
          %p278 = pneg %p156
        $region22: #{tpu_custom_call.1} parent=11 // pred_check_branch
          %280 = sbr.rel (%p278) target = $region24
        $region23: #{tpu_custom_call.1} parent=11 // pred_region
          %s282 = ssub.s32 512, 512
          %283 = vsyncadd [#allocation12], %s282
          %s284 = sshll.u32 [#allocation11], 4
          %s285 = int_to_ptr.vmem [resolvable:$true] %s284
          %290 = dma.hbm_to_vmem [thread:$0]  %s4, 512, %s285, [#allocation12], 128, 128, 8
        $region24: #{tpu_custom_call.1} parent=11 // pred_fallthru
          _
        // Predicated region
        $region25: #{tpu_custom_call.1} parent=11 // pred_check
          %p291 = pneg %p177
        $region26: #{tpu_custom_call.1} parent=11 // pred_check_branch
          %293 = sbr.rel (%p291) target = $region28
        $region27: #{tpu_custom_call.1} parent=11 // pred_region
          %s295 = ssub.s32 512, 512
          %296 = vsyncadd [#allocation12], %s295
          %s297 = sshll.u32 [#allocation13], 4
          %s298 = int_to_ptr.vmem [resolvable:$true] %s297
          %303 = dma.hbm_to_vmem [thread:$0]  %s5, 512, %s298, [#allocation12], 128, 128, 8
        $region28: #{tpu_custom_call.1} parent=11 // pred_fallthru
          _
        // Predicated region
        $region29: #{tpu_custom_call.1} parent=11 // pred_check
          %p304 = pneg %p198
        $region30: #{tpu_custom_call.1} parent=11 // pred_check_branch
          %306 = sbr.rel (%p304) target = $region32
        $region31: #{tpu_custom_call.1} parent=11 // pred_region
          %s308 = ssub.s32 512, 512
          %309 = vsyncadd [#allocation15], %s308
          %s310 = sshll.u32 [#allocation14], 4
          %s311 = int_to_ptr.vmem [resolvable:$true] %s310
          %316 = dma.hbm_to_vmem [thread:$0]  %s6, 512, %s311, [#allocation15], 128, 128, 8
        $region32: #{tpu_custom_call.1} parent=11 // pred_fallthru
          _
        // Predicated region
        $region33: #{tpu_custom_call.1} parent=11 // pred_check
          %p317 = pneg %p219
        $region34: #{tpu_custom_call.1} parent=11 // pred_check_branch
          %319 = sbr.rel (%p317) target = $region36
        $region35: #{tpu_custom_call.1} parent=11 // pred_region
          _
        $region36: #{tpu_custom_call.1} parent=11 // pred_fallthru
          _
      $region12: #{tpu_custom_call.1} parent=5 // pred_fallthru
        _
      %p320 = scmp.lt.s32.totalorder %s25, 2
      // Predicated region
      $region37: #{tpu_custom_call.1} parent=5 // pred_check
        %p321 = pneg %p320
      $region38: #{tpu_custom_call.1} parent=5 // pred_check_branch
        %323 = sbr.rel (%p321) target = $region40
      $region39: #{tpu_custom_call.1} parent=5 // pred_region
        // Predicated region
        $region41: #{tpu_custom_call.1} parent=39 // pred_check
          %p324 = pneg %p59
        $region42: #{tpu_custom_call.1} parent=39 // pred_check_branch
          %326 = sbr.rel (%p324) target = $region44
        $region43: #{tpu_custom_call.1} parent=39 // pred_region
          %s327 = sand.u32 %s49, 1
          %s328 = scalar_lea.sflag [#allocation6], %s327
          %s329 = sand.u32 %s49, 1
          %s330 = smul.addr %s329, 8
          %s331 = scalar_lea.vmem [#allocation5], %s330
          %s332 = smul.u32 4, %s33
          %s334 = ssub.s32 128, 128
          %335 = vsyncadd %s328, %s334
          %s336 = sadd.s32 %s32, %s332
          %s337 = smul.addr %s336, 32
          %s338 = scalar_lea.hbm %s0, %s337
          %s339 = sshll.u32 %s331, 4
          %s340 = int_to_ptr.vmem [resolvable:$true] %s339
          %345 = dma.hbm_to_vmem [thread:$0]  %s338, 128, %s340, %s328, 32, 32, 2
        $region44: #{tpu_custom_call.1} parent=39 // pred_fallthru
          _
        // Predicated region
        $region45: #{tpu_custom_call.1} parent=39 // pred_check
          %p346 = pneg %p87
        $region46: #{tpu_custom_call.1} parent=39 // pred_check_branch
          %348 = sbr.rel (%p346) target = $region48
        $region47: #{tpu_custom_call.1} parent=39 // pred_region
          %s349 = sand.u32 %s25, 1
          %s350 = scalar_lea.sflag [#allocation9], %s349
          %s351 = sand.u32 %s77, 1
          %s352 = smul.addr %s351, 8
          %s353 = scalar_lea.vmem [#allocation8], %s352
          %s354 = smul.u32 4, %s33
          %s356 = ssub.s32 128, 128
          %357 = vsyncadd %s350, %s356
          %s358 = sadd.s32 %s32, %s354
          %s359 = smul.addr %s358, 32
          %s360 = scalar_lea.hbm %s1, %s359
          %s361 = sshll.u32 %s353, 4
          %s362 = int_to_ptr.vmem [resolvable:$true] %s361
          %367 = dma.hbm_to_vmem [thread:$0]  %s360, 128, %s362, %s350, 32, 32, 2
        $region48: #{tpu_custom_call.1} parent=39 // pred_fallthru
          _
      $region40: #{tpu_custom_call.1} parent=5 // pred_fallthru
        _
      %p368 = scmp.le.s32.totalorder 1, %s25
      %p369 = scmp.lt.s32.totalorder %s25, 3
      %p370 = pnand %p368, %p369
      %p371 = pneg %p370
      // Predicated region
      $region49: #{tpu_custom_call.1} parent=5 // pred_check
        _
      $region50: #{tpu_custom_call.1} parent=5 // pred_check_branch
        %373 = sbr.rel (%p370) target = $region52
      $region51: #{tpu_custom_call.1} parent=5 // pred_region
        %s374 = ssub.s32 %s25, 1
        %s375 = sand.u32 %s52, 1
        %s376 = scalar_lea.sflag [#allocation6], %s375
        %s377 = sand.u32 %s52, 1
        %s378 = smul.addr %s377, 8
        %s379 = scalar_lea.vmem [#allocation5], %s378
        // Predicated region
        $region53: #{tpu_custom_call.1} parent=51 // pred_check
          %p380 = pneg %p65
        $region54: #{tpu_custom_call.1} parent=51 // pred_check_branch
          %382 = sbr.rel (%p380) target = $region56
        $region55: #{tpu_custom_call.1} parent=51 // pred_region
          %383 = dma.done %s376, 128
        $region56: #{tpu_custom_call.1} parent=51 // pred_fallthru
          _
        %s384 = sand.u32 %s30, 1
        %s385 = scalar_lea.sflag [#allocation9], %s384
        %s386 = sand.u32 %s80, 1
        %s387 = smul.addr %s386, 8
        %s388 = scalar_lea.vmem [#allocation8], %s387
        // Predicated region
        $region57: #{tpu_custom_call.1} parent=51 // pred_check
          %p389 = pneg %p93
        $region58: #{tpu_custom_call.1} parent=51 // pred_check_branch
          %391 = sbr.rel (%p389) target = $region60
        $region59: #{tpu_custom_call.1} parent=51 // pred_region
          %392 = dma.done %s385, 128
        $region60: #{tpu_custom_call.1} parent=51 // pred_fallthru
          _
        // Predicated region
        $region61: #{tpu_custom_call.1} parent=51 // pred_check
          %p393 = pneg %p114
        $region62: #{tpu_custom_call.1} parent=51 // pred_check_branch
          %395 = sbr.rel (%p393) target = $region64
        $region63: #{tpu_custom_call.1} parent=51 // pred_region
          %396 = dma.done [#allocation9], 640
        $region64: #{tpu_custom_call.1} parent=51 // pred_fallthru
          _
        // Predicated region
        $region65: #{tpu_custom_call.1} parent=51 // pred_check
          %p397 = pneg %p156
        $region66: #{tpu_custom_call.1} parent=51 // pred_check_branch
          %399 = sbr.rel (%p397) target = $region68
        $region67: #{tpu_custom_call.1} parent=51 // pred_region
          %400 = dma.done [#allocation12], 512
        $region68: #{tpu_custom_call.1} parent=51 // pred_fallthru
          _
        // Predicated region
        $region69: #{tpu_custom_call.1} parent=51 // pred_check
          %p401 = pneg %p177
        $region70: #{tpu_custom_call.1} parent=51 // pred_check_branch
          %403 = sbr.rel (%p401) target = $region72
        $region71: #{tpu_custom_call.1} parent=51 // pred_region
          %404 = dma.done [#allocation12], 512
        $region72: #{tpu_custom_call.1} parent=51 // pred_fallthru
          _
        // Predicated region
        $region73: #{tpu_custom_call.1} parent=51 // pred_check
          %p405 = pneg %p198
        $region74: #{tpu_custom_call.1} parent=51 // pred_check_branch
          %407 = sbr.rel (%p405) target = $region76
        $region75: #{tpu_custom_call.1} parent=51 // pred_region
          %408 = dma.done [#allocation15], 512
        $region76: #{tpu_custom_call.1} parent=51 // pred_fallthru
          _
        %s409 = sand.u32 %s52, 1
        %s410 = scalar_lea.sflag [#allocation6], %s409
        %s411 = sand.u32 %s52, 1
        %s412 = smul.addr %s411, 8
        %s413 = scalar_lea.vmem [#allocation5], %s412
        %p414 = pneg %p65
        %p415 = pneg %p62
        %s416 = sand.u32 %s30, 1
        %s417 = scalar_lea.sflag [#allocation9], %s416
        %s418 = sand.u32 %s80, 1
        %s419 = smul.addr %s418, 8
        %s420 = scalar_lea.vmem [#allocation8], %s419
        %p421 = pneg %p93
        %p422 = pneg %p90
        %p423 = pneg %p114
        %p424 = pneg %p111
        %p425 = pneg %p135
        %p426 = pneg %p132
        %p427 = pneg %p156
        %p428 = pneg %p153
        %p429 = pneg %p177
        %p430 = pneg %p174
        %p431 = pneg %p198
        %p432 = pneg %p195
        %p433 = pneg %p219
        %p434 = pneg %p216
        %p435 = pneg %p247
        %p436 = pneg %p244
        %s437 = sand.u32 %s234, 1
        %s438 = scalar_lea.sflag [#allocation7], %s437
        %s439 = sand.u32 %s234, 1
        %s440 = smul.addr %s439, 8
        %s441 = scalar_lea.vmem [#allocation16], %s440
        %s442 = smul.u32 4, %s35
        %s443 = smul.u32 4, %s35
        %s444 = smul.u32 4, %s35
        %p445 = scmp.eq.s32.totalorder %s35, 0
        // Predicated region
        $region77: #{tpu_custom_call.1} parent=51 // pred_check
          %p446 = pneg %p445
        $region78: #{tpu_custom_call.1} parent=51 // pred_check_branch
          %448 = sbr.rel (%p446) target = $region80
        $region79: #{tpu_custom_call.1} parent=51 // pred_region
          %vm449 = vcmask 254976
          %450 = vst.msk [vmem:[#allocation2] sm:$0x3] %vm449, 0.0
        $region80: #{tpu_custom_call.1} parent=51 // pred_fallthru
          _
        %v451 = vld [vmem:[%s379] sm:$0x3]
        %v452 = vld [vmem:[%s379 + $0x2] sm:$0x3]
        %v453 = vld [vmem:[%s379 + $0x4] sm:$0x3]
        %v454 = vld [vmem:[%s379 + $0x6] sm:$0x3]
        %v455 = vld [vmem:[#allocation10] sm:$0xff]
        %v456 = vld [vmem:[#allocation10 + $0x8] sm:$0xff]
        %v457 = vld [vmem:[#allocation10 + $0x10] sm:$0xff]
        %v458 = vld [vmem:[#allocation10 + $0x18] sm:$0xff]
        %v459 = vld [vmem:[#allocation10 + $0x20] sm:$0xff]
        %v460 = vld [vmem:[%s3] sm:$0x1]
        %v462 = vlaneseq
        %v463 = vshrl.u32 %v462, 7
        %v464 = vsub.s32 0, %v463
        %v465 = vrot.slane %v460, %v464
        %v471 = vcombine.low %v451, %v452
        %v472 = vcombine.low %v453, %v454
        %v474 = vunpack.c.l.s4 1983009808
        %v475 = vunpack.c.0.s8 %v474
        %v476 = vlaneseq
        %v477 = vshrl.u32 %v476, 7
        %v478 = vsub.s32 %v475, %v477
        %v479 = vrot.slane %v471, %v478
        %v481 = vunpack.c.l.s4 1983009808
        %v482 = vunpack.c.0.s8 %v481
        %v483 = vlaneseq
        %v484 = vshrl.u32 %v483, 7
        %v485 = vsub.s32 %v482, %v484
        %v486 = vrot.slane %v472, %v485
        %v487 = vcombine.low %v479, %v486
        %vm488 = vcmask 326656
        %v489 = vsel %vm488, %v487, 0
        %491 = vmatprep.subr.mxu0 0.0
        %492 = vmatpush1.msra.mxu0 %v455
        %493 = vmatprep.subr.mxu0 0.0
        %494 = vmatpush1.msra.mxu0 %v456
        %495 = vmatprep.subr.mxu0 0.0
        %496 = vmatpush1.msra.mxu0 %v457
        %497 = vmatprep.subr.mxu0 0.0
        %498 = vmatpush1.msra.mxu0 %v458
        %499 = vmatprep.subr.mxu0 0.0
        %500 = vmatpush1.msra.mxu0 %v459
        %501 = vmatprep.subr.mxu0 0.0
        %502 = vmatpush1.msra.mxu0 0.0
        %503 = vmatprep.subr.mxu0 0.0
        %504 = vmatpush1.msra.mxu0 0.0
        %505 = vmatprep.subr.mxu0 0.0
        %506 = vmatpush1.msra.mxu0 0.0
        %507 = vmatprep.subr.mxu0 0.0
        %508 = vmatpush1.msra.mxu0 0.0
        %509 = vmatprep.subr.mxu0 0.0
        %510 = vmatpush1.msra.mxu0 0.0
        %511 = vmatprep.subr.mxu0 0.0
        %512 = vmatpush1.msra.mxu0 0.0
        %513 = vmatprep.subr.mxu0 0.0
        %514 = vmatpush1.msra.mxu0 0.0
        %515 = vmatprep.subr.mxu0 0.0
        %516 = vmatpush1.msra.mxu0 0.0
        %517 = vmatprep.subr.mxu0 0.0
        %518 = vmatpush1.msra.mxu0 0.0
        %519 = vmatprep.subr.mxu0 0.0
        %520 = vmatpush1.msra.mxu0 0.0
        %521 = vmatprep.subr.mxu0 0.0
        %522 = vmatpush1.msra.mxu0 0.0
        %523 = vmatprep.subr.mxu0 0.0
        %524 = vmatpush1.msra.mxu0 0.0
        %525 = vmatprep.subr.mxu0 0.0
        %526 = vmatpush1.msra.mxu0 0.0
        %527 = vmatprep.subr.mxu0 0.0
        %528 = vmatpush1.msra.mxu0 0.0
        %529 = vmatprep.subr.mxu0 0.0
        %530 = vmatpush1.msra.mxu0 0.0
        %531 = vmatprep.subr.mxu0 0.0
        %532 = vmatpush1.msra.mxu0 0.0
        %533 = vmatprep.subr.mxu0 0.0
        %534 = vmatpush1.msra.mxu0 0.0
        %535 = vmatprep.subr.mxu0 0.0
        %536 = vmatpush1.msra.mxu0 0.0
        %537 = vmatprep.subr.mxu0 0.0
        %538 = vmatpush1.msra.mxu0 0.0
        %539 = vmatprep.subr.mxu0 0.0
        %540 = vmatpush1.msra.mxu0 0.0
        %541 = vmatprep.subr.mxu0 0.0
        %542 = vmatpush1.msra.mxu0 0.0
        %543 = vmatprep.subr.mxu0 0.0
        %544 = vmatpush1.msra.mxu0 0.0
        %545 = vmatprep.subr.mxu0 0.0
        %546 = vmatpush1.msra.mxu0 0.0
        %547 = vmatprep.subr.mxu0 0.0
        %548 = vmatpush1.msra.mxu0 0.0
        %549 = vmatprep.subr.mxu0 0.0
        %550 = vmatpush1.msra.mxu0 0.0
        %551 = vmatprep.subr.mxu0 0.0
        %552 = vmatpush1.msra.mxu0 0.0
        %553 = vmatprep.subr.mxu0 0.0
        %554 = vmatpush1.msra.mxu0 0.0
        %555 = vmatprep.mubr.f32.mxu0 0.0
        %556 = vmatmul.mubr.f32.gmra.mrb[0].mxu0 %v489
        %v557 = vpop.f32.mrb[0].mxu0
        %v558 = vadd.f32 %v465, %v557
        %v559 = vpop.f32.mrb[0].mxu0
        %560 = vdwg.mxu0
        %v562 = vcombine.high %v558, %v558
        %v564 = vunpack.c.l.s4 1983009808
        %v565 = vunpack.c.0.s8 %v564
        %v566 = vlaneseq
        %v567 = vshrl.u32 %v566, 7
        %v568 = vsub.s32 %v565, %v567
        %v569 = vrot.slane %v558, %v568
        %v571 = vunpack.c.l.s4 1983009808
        %v572 = vunpack.c.0.s8 %v571
        %v573 = vlaneseq
        %v574 = vshrl.u32 %v573, 7
        %v575 = vsub.s32 %v572, %v574
        %v576 = vrot.slane %v562, %v575
        %v577 = vcombine.high %v569, %v569
        %v578 = vcombine.high %v576, %v576
        %vm583 = vcmask 779264
        %584 = vst.msk [vmem:[#allocation3] sm:$0x3] %vm583, %v569
        %585 = vst.msk [vmem:[#allocation3 + $0x2] sm:$0x3] %vm583, %v577
        %586 = vst.msk [vmem:[#allocation3 + $0x4] sm:$0x3] %vm583, %v576
        %587 = vst.msk [vmem:[#allocation3 + $0x6] sm:$0x3] %vm583, %v578
        %v588 = vld [vmem:[#allocation11] sm:$0xff]
        %v589 = vld [vmem:[#allocation11 + $0x8] sm:$0xff]
        %v590 = vld [vmem:[#allocation11 + $0x10] sm:$0xff]
        %v591 = vld [vmem:[#allocation11 + $0x18] sm:$0xff]
        %v592 = vld [vmem:[#allocation13] sm:$0xff]
        %v593 = vld [vmem:[#allocation13 + $0x8] sm:$0xff]
        %v594 = vld [vmem:[#allocation13 + $0x10] sm:$0xff]
        %v595 = vld [vmem:[#allocation13 + $0x18] sm:$0xff]
        %v596 = vld [vmem:[#allocation2] sm:$0x3]
        %v597 = vld [vmem:[#allocation3] sm:$0x3]
        %vm598 = vcmask 261120
        %v600 = vsel %vm598, %v596, 0
        %602 = vmatprep.subr.mxu0 0.0
        %603 = vmatpush1.msra.mxu0 %v588
        %604 = vmatprep.subr.mxu0 0.0
        %605 = vmatpush1.msra.mxu0 %v589
        %606 = vmatprep.subr.mxu0 0.0
        %607 = vmatpush1.msra.mxu0 %v590
        %608 = vmatprep.subr.mxu0 0.0
        %609 = vmatpush1.msra.mxu0 %v591
        %610 = vmatprep.subr.mxu0 0.0
        %611 = vmatpush1.msra.mxu0 0.0
        %612 = vmatprep.subr.mxu0 0.0
        %613 = vmatpush1.msra.mxu0 0.0
        %614 = vmatprep.subr.mxu0 0.0
        %615 = vmatpush1.msra.mxu0 0.0
        %616 = vmatprep.subr.mxu0 0.0
        %617 = vmatpush1.msra.mxu0 0.0
        %618 = vmatprep.subr.mxu0 0.0
        %619 = vmatpush1.msra.mxu0 0.0
        %620 = vmatprep.subr.mxu0 0.0
        %621 = vmatpush1.msra.mxu0 0.0
        %622 = vmatprep.subr.mxu0 0.0
        %623 = vmatpush1.msra.mxu0 0.0
        %624 = vmatprep.subr.mxu0 0.0
        %625 = vmatpush1.msra.mxu0 0.0
        %626 = vmatprep.subr.mxu0 0.0
        %627 = vmatpush1.msra.mxu0 0.0
        %628 = vmatprep.subr.mxu0 0.0
        %629 = vmatpush1.msra.mxu0 0.0
        %630 = vmatprep.subr.mxu0 0.0
        %631 = vmatpush1.msra.mxu0 0.0
        %632 = vmatprep.subr.mxu0 0.0
        %633 = vmatpush1.msra.mxu0 0.0
        %634 = vmatprep.subr.mxu0 0.0
        %635 = vmatpush1.msra.mxu0 0.0
        %636 = vmatprep.subr.mxu0 0.0
        %637 = vmatpush1.msra.mxu0 0.0
        %638 = vmatprep.subr.mxu0 0.0
        %639 = vmatpush1.msra.mxu0 0.0
        %640 = vmatprep.subr.mxu0 0.0
        %641 = vmatpush1.msra.mxu0 0.0
        %642 = vmatprep.subr.mxu0 0.0
        %643 = vmatpush1.msra.mxu0 0.0
        %644 = vmatprep.subr.mxu0 0.0
        %645 = vmatpush1.msra.mxu0 0.0
        %646 = vmatprep.subr.mxu0 0.0
        %647 = vmatpush1.msra.mxu0 0.0
        %648 = vmatprep.subr.mxu0 0.0
        %649 = vmatpush1.msra.mxu0 0.0
        %650 = vmatprep.subr.mxu0 0.0
        %651 = vmatpush1.msra.mxu0 0.0
        %652 = vmatprep.subr.mxu0 0.0
        %653 = vmatpush1.msra.mxu0 0.0
        %654 = vmatprep.subr.mxu0 0.0
        %655 = vmatpush1.msra.mxu0 0.0
        %656 = vmatprep.subr.mxu0 0.0
        %657 = vmatpush1.msra.mxu0 0.0
        %658 = vmatprep.subr.mxu0 0.0
        %659 = vmatpush1.msra.mxu0 0.0
        %660 = vmatprep.subr.mxu0 0.0
        %661 = vmatpush1.msra.mxu0 0.0
        %662 = vmatprep.subr.mxu0 0.0
        %663 = vmatpush1.msra.mxu0 0.0
        %664 = vmatprep.subr.mxu0 0.0
        %665 = vmatpush1.msra.mxu0 0.0
        %666 = vmatprep.mubr.f32.mxu0 0.0
        %667 = vmatmul.mubr.f32.gmra.mrb[0].mxu0 %v600
        %v668 = vpop.f32.mrb[0].mxu0
        %v669 = vadd.f32 0.0, %v668
        %v670 = vpop.f32.mrb[0].mxu0
        %671 = vdwg.mxu0
        %v672 = vadd.f32 %v597, %v669
        %v673 = vxor.u32 %v672, 2147483648
        %v674 = vmul.f32 %v673, 1.442695
        %v675 = vpow.pop %v674
        %v676 = vadd.f32 %v675, 1.0
        %v677 = vrcp.pop %v676
        %v678 = vmul.f32 1.0, %v677
        %680 = vrot.lane.b32.xlu0 %v678, 96
        %v681 = vpop.permute.xlu0 %680
        %v683 = vmul.f32 %v596, %v681
        %v685 = vsel %vm598, %v683, 0
        %687 = vmatprep.subr.mxu0 0.0
        %688 = vmatpush1.msra.mxu0 %v592
        %689 = vmatprep.subr.mxu0 0.0
        %690 = vmatpush1.msra.mxu0 %v593
        %691 = vmatprep.subr.mxu0 0.0
        %692 = vmatpush1.msra.mxu0 %v594
        %693 = vmatprep.subr.mxu0 0.0
        %694 = vmatpush1.msra.mxu0 %v595
        %695 = vmatprep.subr.mxu0 0.0
        %696 = vmatpush1.msra.mxu0 0.0
        %697 = vmatprep.subr.mxu0 0.0
        %698 = vmatpush1.msra.mxu0 0.0
        %699 = vmatprep.subr.mxu0 0.0
        %700 = vmatpush1.msra.mxu0 0.0
        %701 = vmatprep.subr.mxu0 0.0
        %702 = vmatpush1.msra.mxu0 0.0
        %703 = vmatprep.subr.mxu0 0.0
        %704 = vmatpush1.msra.mxu0 0.0
        %705 = vmatprep.subr.mxu0 0.0
        %706 = vmatpush1.msra.mxu0 0.0
        %707 = vmatprep.subr.mxu0 0.0
        %708 = vmatpush1.msra.mxu0 0.0
        %709 = vmatprep.subr.mxu0 0.0
        %710 = vmatpush1.msra.mxu0 0.0
        %711 = vmatprep.subr.mxu0 0.0
        %712 = vmatpush1.msra.mxu0 0.0
        %713 = vmatprep.subr.mxu0 0.0
        %714 = vmatpush1.msra.mxu0 0.0
        %715 = vmatprep.subr.mxu0 0.0
        %716 = vmatpush1.msra.mxu0 0.0
        %717 = vmatprep.subr.mxu0 0.0
        %718 = vmatpush1.msra.mxu0 0.0
        %719 = vmatprep.subr.mxu0 0.0
        %720 = vmatpush1.msra.mxu0 0.0
        %721 = vmatprep.subr.mxu0 0.0
        %722 = vmatpush1.msra.mxu0 0.0
        %723 = vmatprep.subr.mxu0 0.0
        %724 = vmatpush1.msra.mxu0 0.0
        %725 = vmatprep.subr.mxu0 0.0
        %726 = vmatpush1.msra.mxu0 0.0
        %727 = vmatprep.subr.mxu0 0.0
        %728 = vmatpush1.msra.mxu0 0.0
        %729 = vmatprep.subr.mxu0 0.0
        %730 = vmatpush1.msra.mxu0 0.0
        %731 = vmatprep.subr.mxu0 0.0
        %732 = vmatpush1.msra.mxu0 0.0
        %733 = vmatprep.subr.mxu0 0.0
        %734 = vmatpush1.msra.mxu0 0.0
        %735 = vmatprep.subr.mxu0 0.0
        %736 = vmatpush1.msra.mxu0 0.0
        %737 = vmatprep.subr.mxu0 0.0
        %738 = vmatpush1.msra.mxu0 0.0
        %739 = vmatprep.subr.mxu0 0.0
        %740 = vmatpush1.msra.mxu0 0.0
        %741 = vmatprep.subr.mxu0 0.0
        %742 = vmatpush1.msra.mxu0 0.0
        %743 = vmatprep.subr.mxu0 0.0
        %744 = vmatpush1.msra.mxu0 0.0
        %745 = vmatprep.subr.mxu0 0.0
        %746 = vmatpush1.msra.mxu0 0.0
        %747 = vmatprep.subr.mxu0 0.0
        %748 = vmatpush1.msra.mxu0 0.0
        %749 = vmatprep.subr.mxu0 0.0
        %750 = vmatpush1.msra.mxu0 0.0
        %751 = vmatprep.mubr.f32.mxu0 0.0
        %752 = vmatmul.mubr.f32.gmra.mrb[0].mxu0 %v685
        %v753 = vpop.f32.mrb[0].mxu0
        %v754 = vadd.f32 0.0, %v753
        %v755 = vpop.f32.mrb[0].mxu0
        %756 = vdwg.mxu0
        %758 = vrot.lane.b32.xlu0 %v754, 64
        %v759 = vpop.permute.xlu0 %758
        %v761 = vadd.f32 %v597, %v759
        %v762 = vtanh.pop %v761
        %763 = vrot.lane.b32.xlu0 %v596, 64
        %v764 = vpop.permute.xlu0 %763
        %v766 = vsub.f32 %v762, %v764
        %768 = vrot.lane.b32.xlu0 %v766, 64
        %v769 = vpop.permute.xlu0 %768
        %v771 = vmul.f32 %v678, %v769
        %v772 = vadd.f32 %v596, %v771
        %vm773 = vcmask 254976
        %774 = vst.msk [vmem:[#allocation4] sm:$0x3] %vm773, %v772
        %s775 = scalar_lea.vmem [#allocation3], 2
        %v776 = vld [vmem:[%s775] sm:$0x3]
        %v778 = vsel %vm598, %v772, 0
        %780 = vmatprep.subr.mxu0 0.0
        %781 = vmatpush1.msra.mxu0 %v588
        %782 = vmatprep.subr.mxu0 0.0
        %783 = vmatpush1.msra.mxu0 %v589
        %784 = vmatprep.subr.mxu0 0.0
        %785 = vmatpush1.msra.mxu0 %v590
        %786 = vmatprep.subr.mxu0 0.0
        %787 = vmatpush1.msra.mxu0 %v591
        %788 = vmatprep.subr.mxu0 0.0
        %789 = vmatpush1.msra.mxu0 0.0
        %790 = vmatprep.subr.mxu0 0.0
        %791 = vmatpush1.msra.mxu0 0.0
        %792 = vmatprep.subr.mxu0 0.0
        %793 = vmatpush1.msra.mxu0 0.0
        %794 = vmatprep.subr.mxu0 0.0
        %795 = vmatpush1.msra.mxu0 0.0
        %796 = vmatprep.subr.mxu0 0.0
        %797 = vmatpush1.msra.mxu0 0.0
        %798 = vmatprep.subr.mxu0 0.0
        %799 = vmatpush1.msra.mxu0 0.0
        %800 = vmatprep.subr.mxu0 0.0
        %801 = vmatpush1.msra.mxu0 0.0
        %802 = vmatprep.subr.mxu0 0.0
        %803 = vmatpush1.msra.mxu0 0.0
        %804 = vmatprep.subr.mxu0 0.0
        %805 = vmatpush1.msra.mxu0 0.0
        %806 = vmatprep.subr.mxu0 0.0
        %807 = vmatpush1.msra.mxu0 0.0
        %808 = vmatprep.subr.mxu0 0.0
        %809 = vmatpush1.msra.mxu0 0.0
        %810 = vmatprep.subr.mxu0 0.0
        %811 = vmatpush1.msra.mxu0 0.0
        %812 = vmatprep.subr.mxu0 0.0
        %813 = vmatpush1.msra.mxu0 0.0
        %814 = vmatprep.subr.mxu0 0.0
        %815 = vmatpush1.msra.mxu0 0.0
        %816 = vmatprep.subr.mxu0 0.0
        %817 = vmatpush1.msra.mxu0 0.0
        %818 = vmatprep.subr.mxu0 0.0
        %819 = vmatpush1.msra.mxu0 0.0
        %820 = vmatprep.subr.mxu0 0.0
        %821 = vmatpush1.msra.mxu0 0.0
        %822 = vmatprep.subr.mxu0 0.0
        %823 = vmatpush1.msra.mxu0 0.0
        %824 = vmatprep.subr.mxu0 0.0
        %825 = vmatpush1.msra.mxu0 0.0
        %826 = vmatprep.subr.mxu0 0.0
        %827 = vmatpush1.msra.mxu0 0.0
        %828 = vmatprep.subr.mxu0 0.0
        %829 = vmatpush1.msra.mxu0 0.0
        %830 = vmatprep.subr.mxu0 0.0
        %831 = vmatpush1.msra.mxu0 0.0
        %832 = vmatprep.subr.mxu0 0.0
        %833 = vmatpush1.msra.mxu0 0.0
        %834 = vmatprep.subr.mxu0 0.0
        %835 = vmatpush1.msra.mxu0 0.0
        %836 = vmatprep.subr.mxu0 0.0
        %837 = vmatpush1.msra.mxu0 0.0
        %838 = vmatprep.subr.mxu0 0.0
        %839 = vmatpush1.msra.mxu0 0.0
        %840 = vmatprep.subr.mxu0 0.0
        %841 = vmatpush1.msra.mxu0 0.0
        %842 = vmatprep.subr.mxu0 0.0
        %843 = vmatpush1.msra.mxu0 0.0
        %844 = vmatprep.mubr.f32.mxu0 0.0
        %845 = vmatmul.mubr.f32.gmra.mrb[0].mxu0 %v778
        %v846 = vpop.f32.mrb[0].mxu0
        %v847 = vadd.f32 0.0, %v846
        %v848 = vpop.f32.mrb[0].mxu0
        %849 = vdwg.mxu0
        %v850 = vadd.f32 %v776, %v847
        %v851 = vxor.u32 %v850, 2147483648
        %v852 = vmul.f32 %v851, 1.442695
        %v853 = vpow.pop %v852
        %v854 = vadd.f32 %v853, 1.0
        %v855 = vrcp.pop %v854
        %v856 = vmul.f32 1.0, %v855
        %858 = vrot.lane.b32.xlu0 %v856, 96
        %v859 = vpop.permute.xlu0 %858
        %v861 = vmul.f32 %v772, %v859
        %v863 = vsel %vm598, %v861, 0
        %865 = vmatprep.subr.mxu0 0.0
        %866 = vmatpush1.msra.mxu0 %v592
        %867 = vmatprep.subr.mxu0 0.0
        %868 = vmatpush1.msra.mxu0 %v593
        %869 = vmatprep.subr.mxu0 0.0
        %870 = vmatpush1.msra.mxu0 %v594
        %871 = vmatprep.subr.mxu0 0.0
        %872 = vmatpush1.msra.mxu0 %v595
        %873 = vmatprep.subr.mxu0 0.0
        %874 = vmatpush1.msra.mxu0 0.0
        %875 = vmatprep.subr.mxu0 0.0
        %876 = vmatpush1.msra.mxu0 0.0
        %877 = vmatprep.subr.mxu0 0.0
        %878 = vmatpush1.msra.mxu0 0.0
        %879 = vmatprep.subr.mxu0 0.0
        %880 = vmatpush1.msra.mxu0 0.0
        %881 = vmatprep.subr.mxu0 0.0
        %882 = vmatpush1.msra.mxu0 0.0
        %883 = vmatprep.subr.mxu0 0.0
        %884 = vmatpush1.msra.mxu0 0.0
        %885 = vmatprep.subr.mxu0 0.0
        %886 = vmatpush1.msra.mxu0 0.0
        %887 = vmatprep.subr.mxu0 0.0
        %888 = vmatpush1.msra.mxu0 0.0
        %889 = vmatprep.subr.mxu0 0.0
        %890 = vmatpush1.msra.mxu0 0.0
        %891 = vmatprep.subr.mxu0 0.0
        %892 = vmatpush1.msra.mxu0 0.0
        %893 = vmatprep.subr.mxu0 0.0
        %894 = vmatpush1.msra.mxu0 0.0
        %895 = vmatprep.subr.mxu0 0.0
        %896 = vmatpush1.msra.mxu0 0.0
        %897 = vmatprep.subr.mxu0 0.0
        %898 = vmatpush1.msra.mxu0 0.0
        %899 = vmatprep.subr.mxu0 0.0
        %900 = vmatpush1.msra.mxu0 0.0
        %901 = vmatprep.subr.mxu0 0.0
        %902 = vmatpush1.msra.mxu0 0.0
        %903 = vmatprep.subr.mxu0 0.0
        %904 = vmatpush1.msra.mxu0 0.0
        %905 = vmatprep.subr.mxu0 0.0
        %906 = vmatpush1.msra.mxu0 0.0
        %907 = vmatprep.subr.mxu0 0.0
        %908 = vmatpush1.msra.mxu0 0.0
        %909 = vmatprep.subr.mxu0 0.0
        %910 = vmatpush1.msra.mxu0 0.0
        %911 = vmatprep.subr.mxu0 0.0
        %912 = vmatpush1.msra.mxu0 0.0
        %913 = vmatprep.subr.mxu0 0.0
        %914 = vmatpush1.msra.mxu0 0.0
        %915 = vmatprep.subr.mxu0 0.0
        %916 = vmatpush1.msra.mxu0 0.0
        %917 = vmatprep.subr.mxu0 0.0
        %918 = vmatpush1.msra.mxu0 0.0
        %919 = vmatprep.subr.mxu0 0.0
        %920 = vmatpush1.msra.mxu0 0.0
        %921 = vmatprep.subr.mxu0 0.0
        %922 = vmatpush1.msra.mxu0 0.0
        %923 = vmatprep.subr.mxu0 0.0
        %924 = vmatpush1.msra.mxu0 0.0
        %925 = vmatprep.subr.mxu0 0.0
        %926 = vmatpush1.msra.mxu0 0.0
        %927 = vmatprep.subr.mxu0 0.0
        %928 = vmatpush1.msra.mxu0 0.0
        %929 = vmatprep.mubr.f32.mxu0 0.0
        %930 = vmatmul.mubr.f32.gmra.mrb[0].mxu0 %v863
        %v931 = vpop.f32.mrb[0].mxu0
        %v932 = vadd.f32 0.0, %v931
        %v933 = vpop.f32.mrb[0].mxu0
        %934 = vdwg.mxu0
        %936 = vrot.lane.b32.xlu0 %v932, 64
        %v937 = vpop.permute.xlu0 %936
        %v939 = vadd.f32 %v776, %v937
        %v940 = vtanh.pop %v939
        %941 = vrot.lane.b32.xlu0 %v772, 64
        %v942 = vpop.permute.xlu0 %941
        %v944 = vsub.f32 %v940, %v942
        %946 = vrot.lane.b32.xlu0 %v944, 64
        %v947 = vpop.permute.xlu0 %946
        %v949 = vmul.f32 %v856, %v947
        %v950 = vadd.f32 %v772, %v949
        %s951 = scalar_lea.vmem [#allocation4], 2
        %952 = vst.msk [vmem:[%s951] sm:$0x3] %vm773, %v950
        %s953 = scalar_lea.vmem [#allocation3], 4
        %v954 = vld [vmem:[%s953] sm:$0x3]
        %v956 = vsel %vm598, %v950, 0
        %958 = vmatprep.subr.mxu0 0.0
        %959 = vmatpush1.msra.mxu0 %v588
        %960 = vmatprep.subr.mxu0 0.0
        %961 = vmatpush1.msra.mxu0 %v589
        %962 = vmatprep.subr.mxu0 0.0
        %963 = vmatpush1.msra.mxu0 %v590
        %964 = vmatprep.subr.mxu0 0.0
        %965 = vmatpush1.msra.mxu0 %v591
        %966 = vmatprep.subr.mxu0 0.0
        %967 = vmatpush1.msra.mxu0 0.0
        %968 = vmatprep.subr.mxu0 0.0
        %969 = vmatpush1.msra.mxu0 0.0
        %970 = vmatprep.subr.mxu0 0.0
        %971 = vmatpush1.msra.mxu0 0.0
        %972 = vmatprep.subr.mxu0 0.0
        %973 = vmatpush1.msra.mxu0 0.0
        %974 = vmatprep.subr.mxu0 0.0
        %975 = vmatpush1.msra.mxu0 0.0
        %976 = vmatprep.subr.mxu0 0.0
        %977 = vmatpush1.msra.mxu0 0.0
        %978 = vmatprep.subr.mxu0 0.0
        %979 = vmatpush1.msra.mxu0 0.0
        %980 = vmatprep.subr.mxu0 0.0
        %981 = vmatpush1.msra.mxu0 0.0
        %982 = vmatprep.subr.mxu0 0.0
        %983 = vmatpush1.msra.mxu0 0.0
        %984 = vmatprep.subr.mxu0 0.0
        %985 = vmatpush1.msra.mxu0 0.0
        %986 = vmatprep.subr.mxu0 0.0
        %987 = vmatpush1.msra.mxu0 0.0
        %988 = vmatprep.subr.mxu0 0.0
        %989 = vmatpush1.msra.mxu0 0.0
        %990 = vmatprep.subr.mxu0 0.0
        %991 = vmatpush1.msra.mxu0 0.0
        %992 = vmatprep.subr.mxu0 0.0
        %993 = vmatpush1.msra.mxu0 0.0
        %994 = vmatprep.subr.mxu0 0.0
        %995 = vmatpush1.msra.mxu0 0.0
        %996 = vmatprep.subr.mxu0 0.0
        %997 = vmatpush1.msra.mxu0 0.0
        %998 = vmatprep.subr.mxu0 0.0
        %999 = vmatpush1.msra.mxu0 0.0
        %1000 = vmatprep.subr.mxu0 0.0
        %1001 = vmatpush1.msra.mxu0 0.0
        %1002 = vmatprep.subr.mxu0 0.0
        %1003 = vmatpush1.msra.mxu0 0.0
        %1004 = vmatprep.subr.mxu0 0.0
        %1005 = vmatpush1.msra.mxu0 0.0
        %1006 = vmatprep.subr.mxu0 0.0
        %1007 = vmatpush1.msra.mxu0 0.0
        %1008 = vmatprep.subr.mxu0 0.0
        %1009 = vmatpush1.msra.mxu0 0.0
        %1010 = vmatprep.subr.mxu0 0.0
        %1011 = vmatpush1.msra.mxu0 0.0
        %1012 = vmatprep.subr.mxu0 0.0
        %1013 = vmatpush1.msra.mxu0 0.0
        %1014 = vmatprep.subr.mxu0 0.0
        %1015 = vmatpush1.msra.mxu0 0.0
        %1016 = vmatprep.subr.mxu0 0.0
        %1017 = vmatpush1.msra.mxu0 0.0
        %1018 = vmatprep.subr.mxu0 0.0
        %1019 = vmatpush1.msra.mxu0 0.0
        %1020 = vmatprep.subr.mxu0 0.0
        %1021 = vmatpush1.msra.mxu0 0.0
        %1022 = vmatprep.mubr.f32.mxu0 0.0
        %1023 = vmatmul.mubr.f32.gmra.mrb[0].mxu0 %v956
        %v1024 = vpop.f32.mrb[0].mxu0
        %v1025 = vadd.f32 0.0, %v1024
        %v1026 = vpop.f32.mrb[0].mxu0
        %1027 = vdwg.mxu0
        %v1028 = vadd.f32 %v954, %v1025
        %v1029 = vxor.u32 %v1028, 2147483648
        %v1030 = vmul.f32 %v1029, 1.442695
        %v1031 = vpow.pop %v1030
        %v1032 = vadd.f32 %v1031, 1.0
        %v1033 = vrcp.pop %v1032
        %v1034 = vmul.f32 1.0, %v1033
        %1036 = vrot.lane.b32.xlu0 %v1034, 96
        %v1037 = vpop.permute.xlu0 %1036
        %v1039 = vmul.f32 %v950, %v1037
        %v1041 = vsel %vm598, %v1039, 0
        %1043 = vmatprep.subr.mxu0 0.0
        %1044 = vmatpush1.msra.mxu0 %v592
        %1045 = vmatprep.subr.mxu0 0.0
        %1046 = vmatpush1.msra.mxu0 %v593
        %1047 = vmatprep.subr.mxu0 0.0
        %1048 = vmatpush1.msra.mxu0 %v594
        %1049 = vmatprep.subr.mxu0 0.0
        %1050 = vmatpush1.msra.mxu0 %v595
        %1051 = vmatprep.subr.mxu0 0.0
        %1052 = vmatpush1.msra.mxu0 0.0
        %1053 = vmatprep.subr.mxu0 0.0
        %1054 = vmatpush1.msra.mxu0 0.0
        %1055 = vmatprep.subr.mxu0 0.0
        %1056 = vmatpush1.msra.mxu0 0.0
        %1057 = vmatprep.subr.mxu0 0.0
        %1058 = vmatpush1.msra.mxu0 0.0
        %1059 = vmatprep.subr.mxu0 0.0
        %1060 = vmatpush1.msra.mxu0 0.0
        %1061 = vmatprep.subr.mxu0 0.0
        %1062 = vmatpush1.msra.mxu0 0.0
        %1063 = vmatprep.subr.mxu0 0.0
        %1064 = vmatpush1.msra.mxu0 0.0
        %1065 = vmatprep.subr.mxu0 0.0
        %1066 = vmatpush1.msra.mxu0 0.0
        %1067 = vmatprep.subr.mxu0 0.0
        %1068 = vmatpush1.msra.mxu0 0.0
        %1069 = vmatprep.subr.mxu0 0.0
        %1070 = vmatpush1.msra.mxu0 0.0
        %1071 = vmatprep.subr.mxu0 0.0
        %1072 = vmatpush1.msra.mxu0 0.0
        %1073 = vmatprep.subr.mxu0 0.0
        %1074 = vmatpush1.msra.mxu0 0.0
        %1075 = vmatprep.subr.mxu0 0.0
        %1076 = vmatpush1.msra.mxu0 0.0
        %1077 = vmatprep.subr.mxu0 0.0
        %1078 = vmatpush1.msra.mxu0 0.0
        %1079 = vmatprep.subr.mxu0 0.0
        %1080 = vmatpush1.msra.mxu0 0.0
        %1081 = vmatprep.subr.mxu0 0.0
        %1082 = vmatpush1.msra.mxu0 0.0
        %1083 = vmatprep.subr.mxu0 0.0
        %1084 = vmatpush1.msra.mxu0 0.0
        %1085 = vmatprep.subr.mxu0 0.0
        %1086 = vmatpush1.msra.mxu0 0.0
        %1087 = vmatprep.subr.mxu0 0.0
        %1088 = vmatpush1.msra.mxu0 0.0
        %1089 = vmatprep.subr.mxu0 0.0
        %1090 = vmatpush1.msra.mxu0 0.0
        %1091 = vmatprep.subr.mxu0 0.0
        %1092 = vmatpush1.msra.mxu0 0.0
        %1093 = vmatprep.subr.mxu0 0.0
        %1094 = vmatpush1.msra.mxu0 0.0
        %1095 = vmatprep.subr.mxu0 0.0
        %1096 = vmatpush1.msra.mxu0 0.0
        %1097 = vmatprep.subr.mxu0 0.0
        %1098 = vmatpush1.msra.mxu0 0.0
        %1099 = vmatprep.subr.mxu0 0.0
        %1100 = vmatpush1.msra.mxu0 0.0
        %1101 = vmatprep.subr.mxu0 0.0
        %1102 = vmatpush1.msra.mxu0 0.0
        %1103 = vmatprep.subr.mxu0 0.0
        %1104 = vmatpush1.msra.mxu0 0.0
        %1105 = vmatprep.subr.mxu0 0.0
        %1106 = vmatpush1.msra.mxu0 0.0
        %1107 = vmatprep.mubr.f32.mxu0 0.0
        %1108 = vmatmul.mubr.f32.gmra.mrb[0].mxu0 %v1041
        %v1109 = vpop.f32.mrb[0].mxu0
        %v1110 = vadd.f32 0.0, %v1109
        %v1111 = vpop.f32.mrb[0].mxu0
        %1112 = vdwg.mxu0
        %1114 = vrot.lane.b32.xlu0 %v1110, 64
        %v1115 = vpop.permute.xlu0 %1114
        %v1117 = vadd.f32 %v954, %v1115
        %v1118 = vtanh.pop %v1117
        %1119 = vrot.lane.b32.xlu0 %v950, 64
        %v1120 = vpop.permute.xlu0 %1119
        %v1122 = vsub.f32 %v1118, %v1120
        %1124 = vrot.lane.b32.xlu0 %v1122, 64
        %v1125 = vpop.permute.xlu0 %1124
        %v1127 = vmul.f32 %v1034, %v1125
        %v1128 = vadd.f32 %v950, %v1127
        %s1129 = scalar_lea.vmem [#allocation4], 4
        %1130 = vst.msk [vmem:[%s1129] sm:$0x3] %vm773, %v1128
        %s1131 = scalar_lea.vmem [#allocation3], 6
        %v1132 = vld [vmem:[%s1131] sm:$0x3]
        %v1134 = vsel %vm598, %v1128, 0
        %1136 = vmatprep.subr.mxu0 0.0
        %1137 = vmatpush1.msra.mxu0 %v588
        %1138 = vmatprep.subr.mxu0 0.0
        %1139 = vmatpush1.msra.mxu0 %v589
        %1140 = vmatprep.subr.mxu0 0.0
        %1141 = vmatpush1.msra.mxu0 %v590
        %1142 = vmatprep.subr.mxu0 0.0
        %1143 = vmatpush1.msra.mxu0 %v591
        %1144 = vmatprep.subr.mxu0 0.0
        %1145 = vmatpush1.msra.mxu0 0.0
        %1146 = vmatprep.subr.mxu0 0.0
        %1147 = vmatpush1.msra.mxu0 0.0
        %1148 = vmatprep.subr.mxu0 0.0
        %1149 = vmatpush1.msra.mxu0 0.0
        %1150 = vmatprep.subr.mxu0 0.0
        %1151 = vmatpush1.msra.mxu0 0.0
        %1152 = vmatprep.subr.mxu0 0.0
        %1153 = vmatpush1.msra.mxu0 0.0
        %1154 = vmatprep.subr.mxu0 0.0
        %1155 = vmatpush1.msra.mxu0 0.0
        %1156 = vmatprep.subr.mxu0 0.0
        %1157 = vmatpush1.msra.mxu0 0.0
        %1158 = vmatprep.subr.mxu0 0.0
        %1159 = vmatpush1.msra.mxu0 0.0
        %1160 = vmatprep.subr.mxu0 0.0
        %1161 = vmatpush1.msra.mxu0 0.0
        %1162 = vmatprep.subr.mxu0 0.0
        %1163 = vmatpush1.msra.mxu0 0.0
        %1164 = vmatprep.subr.mxu0 0.0
        %1165 = vmatpush1.msra.mxu0 0.0
        %1166 = vmatprep.subr.mxu0 0.0
        %1167 = vmatpush1.msra.mxu0 0.0
        %1168 = vmatprep.subr.mxu0 0.0
        %1169 = vmatpush1.msra.mxu0 0.0
        %1170 = vmatprep.subr.mxu0 0.0
        %1171 = vmatpush1.msra.mxu0 0.0
        %1172 = vmatprep.subr.mxu0 0.0
        %1173 = vmatpush1.msra.mxu0 0.0
        %1174 = vmatprep.subr.mxu0 0.0
        %1175 = vmatpush1.msra.mxu0 0.0
        %1176 = vmatprep.subr.mxu0 0.0
        %1177 = vmatpush1.msra.mxu0 0.0
        %1178 = vmatprep.subr.mxu0 0.0
        %1179 = vmatpush1.msra.mxu0 0.0
        %1180 = vmatprep.subr.mxu0 0.0
        %1181 = vmatpush1.msra.mxu0 0.0
        %1182 = vmatprep.subr.mxu0 0.0
        %1183 = vmatpush1.msra.mxu0 0.0
        %1184 = vmatprep.subr.mxu0 0.0
        %1185 = vmatpush1.msra.mxu0 0.0
        %1186 = vmatprep.subr.mxu0 0.0
        %1187 = vmatpush1.msra.mxu0 0.0
        %1188 = vmatprep.subr.mxu0 0.0
        %1189 = vmatpush1.msra.mxu0 0.0
        %1190 = vmatprep.subr.mxu0 0.0
        %1191 = vmatpush1.msra.mxu0 0.0
        %1192 = vmatprep.subr.mxu0 0.0
        %1193 = vmatpush1.msra.mxu0 0.0
        %1194 = vmatprep.subr.mxu0 0.0
        %1195 = vmatpush1.msra.mxu0 0.0
        %1196 = vmatprep.subr.mxu0 0.0
        %1197 = vmatpush1.msra.mxu0 0.0
        %1198 = vmatprep.subr.mxu0 0.0
        %1199 = vmatpush1.msra.mxu0 0.0
        %1200 = vmatprep.mubr.f32.mxu0 0.0
        %1201 = vmatmul.mubr.f32.gmra.mrb[0].mxu0 %v1134
        %v1202 = vpop.f32.mrb[0].mxu0
        %v1203 = vadd.f32 0.0, %v1202
        %v1204 = vpop.f32.mrb[0].mxu0
        %1205 = vdwg.mxu0
        %v1206 = vadd.f32 %v1132, %v1203
        %v1207 = vxor.u32 %v1206, 2147483648
        %v1208 = vmul.f32 %v1207, 1.442695
        %v1209 = vpow.pop %v1208
        %v1210 = vadd.f32 %v1209, 1.0
        %v1211 = vrcp.pop %v1210
        %v1212 = vmul.f32 1.0, %v1211
        %1214 = vrot.lane.b32.xlu0 %v1212, 96
        %v1215 = vpop.permute.xlu0 %1214
        %v1217 = vmul.f32 %v1128, %v1215
        %v1219 = vsel %vm598, %v1217, 0
        %1221 = vmatprep.subr.mxu0 0.0
        %1222 = vmatpush1.msra.mxu0 %v592
        %1223 = vmatprep.subr.mxu0 0.0
        %1224 = vmatpush1.msra.mxu0 %v593
        %1225 = vmatprep.subr.mxu0 0.0
        %1226 = vmatpush1.msra.mxu0 %v594
        %1227 = vmatprep.subr.mxu0 0.0
        %1228 = vmatpush1.msra.mxu0 %v595
        %1229 = vmatprep.subr.mxu0 0.0
        %1230 = vmatpush1.msra.mxu0 0.0
        %1231 = vmatprep.subr.mxu0 0.0
        %1232 = vmatpush1.msra.mxu0 0.0
        %1233 = vmatprep.subr.mxu0 0.0
        %1234 = vmatpush1.msra.mxu0 0.0
        %1235 = vmatprep.subr.mxu0 0.0
        %1236 = vmatpush1.msra.mxu0 0.0
        %1237 = vmatprep.subr.mxu0 0.0
        %1238 = vmatpush1.msra.mxu0 0.0
        %1239 = vmatprep.subr.mxu0 0.0
        %1240 = vmatpush1.msra.mxu0 0.0
        %1241 = vmatprep.subr.mxu0 0.0
        %1242 = vmatpush1.msra.mxu0 0.0
        %1243 = vmatprep.subr.mxu0 0.0
        %1244 = vmatpush1.msra.mxu0 0.0
        %1245 = vmatprep.subr.mxu0 0.0
        %1246 = vmatpush1.msra.mxu0 0.0
        %1247 = vmatprep.subr.mxu0 0.0
        %1248 = vmatpush1.msra.mxu0 0.0
        %1249 = vmatprep.subr.mxu0 0.0
        %1250 = vmatpush1.msra.mxu0 0.0
        %1251 = vmatprep.subr.mxu0 0.0
        %1252 = vmatpush1.msra.mxu0 0.0
        %1253 = vmatprep.subr.mxu0 0.0
        %1254 = vmatpush1.msra.mxu0 0.0
        %1255 = vmatprep.subr.mxu0 0.0
        %1256 = vmatpush1.msra.mxu0 0.0
        %1257 = vmatprep.subr.mxu0 0.0
        %1258 = vmatpush1.msra.mxu0 0.0
        %1259 = vmatprep.subr.mxu0 0.0
        %1260 = vmatpush1.msra.mxu0 0.0
        %1261 = vmatprep.subr.mxu0 0.0
        %1262 = vmatpush1.msra.mxu0 0.0
        %1263 = vmatprep.subr.mxu0 0.0
        %1264 = vmatpush1.msra.mxu0 0.0
        %1265 = vmatprep.subr.mxu0 0.0
        %1266 = vmatpush1.msra.mxu0 0.0
        %1267 = vmatprep.subr.mxu0 0.0
        %1268 = vmatpush1.msra.mxu0 0.0
        %1269 = vmatprep.subr.mxu0 0.0
        %1270 = vmatpush1.msra.mxu0 0.0
        %1271 = vmatprep.subr.mxu0 0.0
        %1272 = vmatpush1.msra.mxu0 0.0
        %1273 = vmatprep.subr.mxu0 0.0
        %1274 = vmatpush1.msra.mxu0 0.0
        %1275 = vmatprep.subr.mxu0 0.0
        %1276 = vmatpush1.msra.mxu0 0.0
        %1277 = vmatprep.subr.mxu0 0.0
        %1278 = vmatpush1.msra.mxu0 0.0
        %1279 = vmatprep.subr.mxu0 0.0
        %1280 = vmatpush1.msra.mxu0 0.0
        %1281 = vmatprep.subr.mxu0 0.0
        %1282 = vmatpush1.msra.mxu0 0.0
        %1283 = vmatprep.subr.mxu0 0.0
        %1284 = vmatpush1.msra.mxu0 0.0
        %1285 = vmatprep.mubr.f32.mxu0 0.0
        %1286 = vmatmul.mubr.f32.gmra.mrb[0].mxu0 %v1219
        %v1287 = vpop.f32.mrb[0].mxu0
        %v1288 = vadd.f32 0.0, %v1287
        %v1289 = vpop.f32.mrb[0].mxu0
        %1290 = vdwg.mxu0
        %1292 = vrot.lane.b32.xlu0 %v1288, 64
        %v1293 = vpop.permute.xlu0 %1292
        %v1295 = vadd.f32 %v1132, %v1293
        %v1296 = vtanh.pop %v1295
        %1297 = vrot.lane.b32.xlu0 %v1128, 64
        %v1298 = vpop.permute.xlu0 %1297
        %v1300 = vsub.f32 %v1296, %v1298
        %1302 = vrot.lane.b32.xlu0 %v1300, 64
        %v1303 = vpop.permute.xlu0 %1302
        %v1305 = vmul.f32 %v1212, %v1303
        %v1306 = vadd.f32 %v1128, %v1305
        %s1307 = scalar_lea.vmem [#allocation4], 6
        %1308 = vst.msk [vmem:[%s1307] sm:$0x3] %vm773, %v1306
        %1309 = vst.msk [vmem:[#allocation2] sm:$0x3] %vm773, %v1306
        %v1310 = vld [vmem:[#allocation4] sm:$0x3]
        %v1311 = vld [vmem:[#allocation4 + $0x2] sm:$0x3]
        %v1312 = vld [vmem:[#allocation4 + $0x4] sm:$0x3]
        %v1313 = vld [vmem:[#allocation4 + $0x6] sm:$0x3]
        %v1314 = vld [vmem:[#allocation14] sm:$0xff]
        %v1315 = vld [vmem:[#allocation14 + $0x8] sm:$0xff]
        %v1316 = vld [vmem:[#allocation14 + $0x10] sm:$0xff]
        %v1317 = vld [vmem:[#allocation14 + $0x18] sm:$0xff]
        %v1322 = vcombine.low %v1310, %v1311
        %v1323 = vcombine.low %v1312, %v1313
        %v1325 = vunpack.c.l.s4 1983009808
        %v1326 = vunpack.c.0.s8 %v1325
        %v1327 = vlaneseq
        %v1328 = vshrl.u32 %v1327, 7
        %v1329 = vsub.s32 %v1326, %v1328
        %v1330 = vrot.slane %v1322, %v1329
        %v1332 = vunpack.c.l.s4 1983009808
        %v1333 = vunpack.c.0.s8 %v1332
        %v1334 = vlaneseq
        %v1335 = vshrl.u32 %v1334, 7
        %v1336 = vsub.s32 %v1333, %v1335
        %v1337 = vrot.slane %v1323, %v1336
        %v1338 = vcombine.low %v1330, %v1337
        %v1339 = vsel %vm598, %v1338, 0
        %1341 = vmatprep.subr.mxu0 0.0
        %1342 = vmatpush1.msra.mxu0 %v1314
        %1343 = vmatprep.subr.mxu0 0.0
        %1344 = vmatpush1.msra.mxu0 %v1315
        %1345 = vmatprep.subr.mxu0 0.0
        %1346 = vmatpush1.msra.mxu0 %v1316
        %1347 = vmatprep.subr.mxu0 0.0
        %1348 = vmatpush1.msra.mxu0 %v1317
        %1349 = vmatprep.subr.mxu0 0.0
        %1350 = vmatpush1.msra.mxu0 0.0
        %1351 = vmatprep.subr.mxu0 0.0
        %1352 = vmatpush1.msra.mxu0 0.0
        %1353 = vmatprep.subr.mxu0 0.0
        %1354 = vmatpush1.msra.mxu0 0.0
        %1355 = vmatprep.subr.mxu0 0.0
        %1356 = vmatpush1.msra.mxu0 0.0
        %1357 = vmatprep.subr.mxu0 0.0
        %1358 = vmatpush1.msra.mxu0 0.0
        %1359 = vmatprep.subr.mxu0 0.0
        %1360 = vmatpush1.msra.mxu0 0.0
        %1361 = vmatprep.subr.mxu0 0.0
        %1362 = vmatpush1.msra.mxu0 0.0
        %1363 = vmatprep.subr.mxu0 0.0
        %1364 = vmatpush1.msra.mxu0 0.0
        %1365 = vmatprep.subr.mxu0 0.0
        %1366 = vmatpush1.msra.mxu0 0.0
        %1367 = vmatprep.subr.mxu0 0.0
        %1368 = vmatpush1.msra.mxu0 0.0
        %1369 = vmatprep.subr.mxu0 0.0
        %1370 = vmatpush1.msra.mxu0 0.0
        %1371 = vmatprep.subr.mxu0 0.0
        %1372 = vmatpush1.msra.mxu0 0.0
        %1373 = vmatprep.subr.mxu0 0.0
        %1374 = vmatpush1.msra.mxu0 0.0
        %1375 = vmatprep.subr.mxu0 0.0
        %1376 = vmatpush1.msra.mxu0 0.0
        %1377 = vmatprep.subr.mxu0 0.0
        %1378 = vmatpush1.msra.mxu0 0.0
        %1379 = vmatprep.subr.mxu0 0.0
        %1380 = vmatpush1.msra.mxu0 0.0
        %1381 = vmatprep.subr.mxu0 0.0
        %1382 = vmatpush1.msra.mxu0 0.0
        %1383 = vmatprep.subr.mxu0 0.0
        %1384 = vmatpush1.msra.mxu0 0.0
        %1385 = vmatprep.subr.mxu0 0.0
        %1386 = vmatpush1.msra.mxu0 0.0
        %1387 = vmatprep.subr.mxu0 0.0
        %1388 = vmatpush1.msra.mxu0 0.0
        %1389 = vmatprep.subr.mxu0 0.0
        %1390 = vmatpush1.msra.mxu0 0.0
        %1391 = vmatprep.subr.mxu0 0.0
        %1392 = vmatpush1.msra.mxu0 0.0
        %1393 = vmatprep.subr.mxu0 0.0
        %1394 = vmatpush1.msra.mxu0 0.0
        %1395 = vmatprep.subr.mxu0 0.0
        %1396 = vmatpush1.msra.mxu0 0.0
        %1397 = vmatprep.subr.mxu0 0.0
        %1398 = vmatpush1.msra.mxu0 0.0
        %1399 = vmatprep.subr.mxu0 0.0
        %1400 = vmatpush1.msra.mxu0 0.0
        %1401 = vmatprep.subr.mxu0 0.0
        %1402 = vmatpush1.msra.mxu0 0.0
        %1403 = vmatprep.subr.mxu0 0.0
        %1404 = vmatpush1.msra.mxu0 0.0
        %1405 = vmatprep.mubr.f32.mxu0 0.0
        %1406 = vmatmul.mubr.f32.gmra.mrb[0].mxu0 %v1339
        %v1407 = vpop.f32.mrb[0].mxu0
        %v1408 = vadd.f32 0.0, %v1407
        %v1409 = vpop.f32.mrb[0].mxu0
        %1410 = vdwg.mxu0
        %v1412 = vcombine.high %v1408, %v1408
        %v1414 = vunpack.c.l.s4 1983009808
        %v1415 = vunpack.c.0.s8 %v1414
        %v1416 = vlaneseq
        %v1417 = vshrl.u32 %v1416, 7
        %v1418 = vsub.s32 %v1415, %v1417
        %v1419 = vrot.slane %v1408, %v1418
        %v1421 = vunpack.c.l.s4 1983009808
        %v1422 = vunpack.c.0.s8 %v1421
        %v1423 = vlaneseq
        %v1424 = vshrl.u32 %v1423, 7
        %v1425 = vsub.s32 %v1422, %v1424
        %v1426 = vrot.slane %v1412, %v1425
        %v1427 = vcombine.high %v1419, %v1419
        %v1428 = vcombine.high %v1426, %v1426
        %v1433 = vld [vmem:[%s388] sm:$0x3]
        %v1434 = vld [vmem:[%s388 + $0x2] sm:$0x3]
        %v1435 = vld [vmem:[%s388 + $0x4] sm:$0x3]
        %v1436 = vld [vmem:[%s388 + $0x6] sm:$0x3]
        %v1437 = vadd.f32 %v1433, 1.0
        %v1438 = vadd.f32 %v1434, 1.0
        %v1439 = vadd.f32 %v1435, 1.0
        %v1440 = vadd.f32 %v1436, 1.0
        %v1441 = vmul.f32 %v1419, %v1437
        %v1442 = vmul.f32 %v1427, %v1438
        %v1443 = vmul.f32 %v1426, %v1439
        %v1444 = vmul.f32 %v1428, %v1440
        %v1445 = vld [vmem:[%s7] sm:$0x1]
        %v1447 = vlaneseq
        %v1448 = vshrl.u32 %v1447, 7
        %v1449 = vsub.s32 0, %v1448
        %v1450 = vrot.slane %v1445, %v1449
        %v1452 = vadd.f32 %v1441, %v1450
        %v1453 = vadd.f32 %v1442, %v1450
        %v1454 = vadd.f32 %v1443, %v1450
        %v1455 = vadd.f32 %v1444, %v1450
        %v1456 = vxor.u32 %v1452, 2147483648
        %v1457 = vxor.u32 %v1453, 2147483648
        %v1458 = vxor.u32 %v1454, 2147483648
        %v1459 = vxor.u32 %v1455, 2147483648
        %v1460 = vmul.f32 %v1456, 1.442695
        %v1461 = vpow.pop %v1460
        %v1462 = vmul.f32 %v1457, 1.442695
        %v1463 = vpow.pop %v1462
        %v1464 = vmul.f32 %v1458, 1.442695
        %v1465 = vpow.pop %v1464
        %v1466 = vmul.f32 %v1459, 1.442695
        %v1467 = vpow.pop %v1466
        %v1468 = vadd.f32 %v1461, 1.0
        %v1469 = vadd.f32 %v1463, 1.0
        %v1470 = vadd.f32 %v1465, 1.0
        %v1471 = vadd.f32 %v1467, 1.0
        %v1472 = vrcp.pop %v1468
        %v1473 = vmul.f32 1.0, %v1472
        %v1474 = vrcp.pop %v1469
        %v1475 = vmul.f32 1.0, %v1474
        %v1476 = vrcp.pop %v1470
        %v1477 = vmul.f32 1.0, %v1476
        %v1478 = vrcp.pop %v1471
        %v1479 = vmul.f32 1.0, %v1478
        %1480 = vst.msk [vmem:[%s441] sm:$0x3] %vm773, %v1473
        %1481 = vst.msk [vmem:[%s441 + $0x2] sm:$0x3] %vm773, %v1475
        %1482 = vst.msk [vmem:[%s441 + $0x4] sm:$0x3] %vm773, %v1477
        %1483 = vst.msk [vmem:[%s441 + $0x6] sm:$0x3] %vm773, %v1479
        %s1484 = sand.u32 %s234, 1
        %s1485 = scalar_lea.sflag [#allocation7], %s1484
        %s1486 = sand.u32 %s234, 1
        %s1487 = smul.addr %s1486, 8
        %s1488 = scalar_lea.vmem [#allocation16], %s1487
        // Predicated region
        $region81: #{tpu_custom_call.1} parent=51 // pred_check
          %p1489 = pneg %p244
        $region82: #{tpu_custom_call.1} parent=51 // pred_check_branch
          %1491 = sbr.rel (%p1489) target = $region84
        $region83: #{tpu_custom_call.1} parent=51 // pred_region
          %s1492 = smul.u32 4, %s35
          %s1494 = ssub.s32 128, 128
          %1495 = vsyncadd %s1485, %s1494
          %s1496 = sadd.s32 %s34, %s1492
          %s1497 = smul.addr %s1496, 32
          %s1498 = scalar_lea.hbm %s8, %s1497
          %s1499 = sshll.u32 %s1488, 4
          %s1500 = int_to_ptr.vmem [resolvable:$true] %s1499
          %1505 = dma.vmem_to_hbm [thread:$0]  %s1500, 128, %s1498, %s1485, 32, 32, 2
        $region84: #{tpu_custom_call.1} parent=51 // pred_fallthru
          _
      $region52: #{tpu_custom_call.1} parent=5 // pred_fallthru
        _
      %p1506 = scmp.le.s32.totalorder 2, %s25
      // Predicated region
      $region85: #{tpu_custom_call.1} parent=5 // pred_check
        %p1507 = pneg %p1506
      $region86: #{tpu_custom_call.1} parent=5 // pred_check_branch
        %1509 = sbr.rel (%p1507) target = $region88
      $region87: #{tpu_custom_call.1} parent=5 // pred_region
        %s1510 = ssub.s32 %s25, 2
        // Predicated region
        $region89: #{tpu_custom_call.1} parent=87 // pred_check
          %p1511 = pneg %p250
        $region90: #{tpu_custom_call.1} parent=87 // pred_check_branch
          %1513 = sbr.rel (%p1511) target = $region92
        $region91: #{tpu_custom_call.1} parent=87 // pred_region
          %s1514 = sand.u32 %s235, 1
          %s1515 = scalar_lea.sflag [#allocation7], %s1514
          %s1516 = sand.u32 %s235, 1
          %s1517 = smul.addr %s1516, 8
          %s1518 = scalar_lea.vmem [#allocation16], %s1517
          %1519 = dma.done %s1515, 128
        $region92: #{tpu_custom_call.1} parent=87 // pred_fallthru
          _
      $region88: #{tpu_custom_call.1} parent=5 // pred_fallthru
        _
    $region6: #{tpu_custom_call.1} parent=1 // loop_footer
      %s29 = sadd.s32 1, %s25
    $region7: #{tpu_custom_call.1} parent=1 // loop_footer_branch
      %24 = sbr.rel target = $region3
    $region8: #{tpu_custom_call.1} parent=1 // loop_exit
      _
    %1520 = vsyncpa [#allocation6], 1
    %s1521 = scalar_lea.sflag [#allocation6], 1
    %1522 = vsyncpa %s1521, 1
    %1523 = vsyncpa [#allocation9], 1
    %s1524 = scalar_lea.sflag [#allocation9], 1
    %1525 = vsyncpa %s1524, 1
    %1526 = vsyncpa [#allocation12], 1
    %1527 = vsyncpa [#allocation15], 1
    %1528 = vsyncpa [#allocation7], 1
    %s1529 = scalar_lea.sflag [#allocation7], 1
    %1530 = vsyncpa %s1529, 1

</llo_original>
